<compile_context>
chip_gen: v7x
topology: tpu7x:2x2x1
jax: 0.10.0
libtpu: 0.0.40
codegen_flags: <defaults>
</compile_context>

<pallas_src>
import numpy as np

import jax
import jax.numpy as jnp
from jax.experimental import pallas as pl
from jax.experimental.pallas import tpu as pltpu


def _round_up(x, m):
    return (x + m - 1) // m * m


def _batch_tiling(b):
    """Pad the batch to a sublane multiple and pick a tile size.

    Prefers >=2 grid tiles when the (padded) batch permits so the 'parallel'
    grid axis can be sharded across both v7x TensorCores.
    """
    b_pad = _round_up(max(b, 8), 8)
    for bb in (128, 64, 32, 16, 8):
        if b_pad % bb == 0 and b_pad // bb >= 2:
            return b_pad, bb
    for bb in (128, 64, 32, 16, 8):
        if b_pad % bb == 0:
            return b_pad, bb
    return b_pad, b_pad


# ----------------------------------------------------------------------------
# Fused Pallas kernel: im2col conv (all kernel sizes at once) + bias + mask +
# max-over-time + ReLU for both branches, then the final FC, in one kernel.
# ----------------------------------------------------------------------------
def _make_fused_kernel(kernel_sizes, Lp, Lw, E, C, Bb):
    nk = len(kernel_sizes)
    nkC = nk * C
    kmax = max(kernel_sizes)

    def kernel(x1_ref, x2_ref, w1_ref, b1_ref, w2_ref, b2_ref,
               mask_ref, fcw1_ref, fcw2_ref, fcb_ref, out_ref):
        # Additive window-validity mask (0 valid, -1e30 invalid), precomputed in
        # the wrapper and shared by both branches — no per-k iota in the kernel.
        neg_mask = mask_ref[...]                       # (Lw, nkC) f32

        def branch(x_ref, w_ref, b_ref):
            # bf16 activations streamed from HBM (half the DMA bytes); widen
            # once so the lane-offset im2col concat runs on 32-bit elements.
            x = x_ref[...].astype(jnp.float32)          # (Bb, Lp, E)
            # im2col built ONCE per branch: kmax shifted views along the lanes.
            cols = jnp.concatenate(
                [x[:, dk:dk + Lw, :] for dk in range(kmax)], axis=2)
            cols = cols.reshape(Bb * Lw, kmax * E).astype(jnp.bfloat16)
            # ONE fused matmul for all kernel sizes: smaller convs' weights are
            # zero-padded along the tap axis, so extra taps contribute exactly 0.
            y = jnp.dot(cols, w_ref[...],
                        preferred_element_type=jnp.float32)   # (Bb*Lw, nkC)
            y = (y + b_ref[...]).reshape(Bb, Lw, nkC)
            # Mask invalid windows, max over time, then ReLU.  ReLU is monotone,
            # so relu(max(valid)) == max(relu(valid)) == PyTorch's relu-then-max.
            y = jnp.max(y + neg_mask, axis=1)           # (Bb, nkC)
            return jnp.maximum(y, 0.0)

        f1 = branch(x1_ref, w1_ref, b1_ref)
        f2 = branch(x2_ref, w2_ref, b2_ref)

        # TODO(synk): nn.Dropout(0.5) is identity in eval/inference mode; no-op.
        # FC without the feature concat: the weight is split per branch so the
        # 48-lane feature pieces never need a lane-concat; output is a
        # lane-dense 128-wide padded slab (sliced to num_classes outside).
        out_ref[...] = (
            jnp.dot(f1, fcw1_ref[...], preferred_element_type=jnp.float32)
            + jnp.dot(f2, fcw2_ref[...], preferred_element_type=jnp.float32)
            + fcb_ref[...])

    return kernel


# ----------------------------------------------------------------------------
# Wrapper
# ----------------------------------------------------------------------------
def dual_text_cnn_forward(params, input1, input2):
    emb = params["emb"]                       # (V, E) f32
    fc_w, fc_b = params["fc_w"], params["fc_b"]
    V, E = emb.shape
    kernel_sizes = tuple(w.shape[0] for w in params["convs1"][0])
    nk = len(kernel_sizes)
    C = params["convs1"][0][0].shape[2]
    nkC = nk * C
    B, L = input1.shape
    F, N = fc_w.shape
    kmax = max(kernel_sizes)

    Lw = _round_up(L, 8)                      # conv windows computed per sample
    Lp = _round_up(Lw + kmax - 1, 8)          # padded sequence length
    n_pad = _round_up(max(N, 128), 128)       # lane-dense FC output width
    B_pad, Bb = _batch_tiling(B)

    # ---- Embedding: HBM-resident table, XLA row gather (no one-hot) --------
    # Both inputs are gathered with a single jnp.take; table never enters VMEM.
    # TODO(synk): could be fused in-kernel via a manual DMA row gather.
    emb_bf = emb.astype(jnp.bfloat16)

    def prep(tok):
        tok = jnp.asarray(tok, jnp.int32)
        return jnp.pad(tok, ((0, B_pad - B), (0, Lp - L)))

    tok_all = jnp.concatenate([prep(input1), prep(input2)], axis=0)
    x_all = jnp.take(emb_bf, tok_all, axis=0)          # (2*B_pad, Lp, E) bf16
    x1, x2 = x_all[:B_pad], x_all[B_pad:]

    # ---- Pack each branch's nk conv weights into one [kmax*E, nk*C] matrix --
    def pack_branch(branch):
        ws, bs = branch
        wp = jnp.zeros((kmax * E, nkC), jnp.float32)
        bp = jnp.zeros((1, nkC), jnp.float32)
        for g, (w, b) in enumerate(zip(ws, bs)):
            k = w.shape[0]                              # w: (k, E, C) tap-major
            wp = wp.at[: k * E, g * C:(g + 1) * C].set(w.reshape(k * E, C))
            bp = bp.at[0, g * C:(g + 1) * C].set(b)
        return wp.astype(jnp.bfloat16), bp

    w1p, b1p = pack_branch(params["convs1"])
    w2p, b2p = pack_branch(params["convs2"])

    # Additive validity mask over (window, channel-group): 0 valid, -1e30 invalid.
    neg = np.zeros((Lw, nkC), np.float32)
    for g, k in enumerate(kernel_sizes):
        neg[L - k + 1:, g * C:(g + 1) * C] = -1e30
    neg_mask = jnp.asarray(neg)

    # Lane-padded FC weights, split per branch so no feature concat is needed.
    fcw1 = jnp.zeros((nkC, n_pad), jnp.float32).at[:, :N].set(fc_w[:nkC])
    fcw2 = jnp.zeros((nkC, n_pad), jnp.float32).at[:, :N].set(fc_w[nkC:])
    fcb = jnp.zeros((1, n_pad), jnp.float32).at[:, :N].set(fc_b.reshape(1, N))

    kernel = _make_fused_kernel(kernel_sizes, Lp, Lw, E, C, Bb)
    const = lambda i: (0, 0)
    out = pl.pallas_call(
        kernel,
        out_shape=jax.ShapeDtypeStruct((B_pad, n_pad), jnp.float32),
        grid=(B_pad // Bb,),
        in_specs=[
            pl.BlockSpec((Bb, Lp, E), lambda i: (i, 0, 0)),   # x1
            pl.BlockSpec((Bb, Lp, E), lambda i: (i, 0, 0)),   # x2
            pl.BlockSpec((kmax * E, nkC), const),             # packed conv W1
            pl.BlockSpec((1, nkC), const),                    # packed conv b1
            pl.BlockSpec((kmax * E, nkC), const),             # packed conv W2
            pl.BlockSpec((1, nkC), const),                    # packed conv b2
            pl.BlockSpec((Lw, nkC), const),                   # additive mask
            pl.BlockSpec((nkC, n_pad), const),                # fc W (branch 1)
            pl.BlockSpec((nkC, n_pad), const),                # fc W (branch 2)
            pl.BlockSpec((1, n_pad), const),                  # fc bias
        ],
        out_specs=pl.BlockSpec((Bb, n_pad), lambda i: (i, 0)),
        compiler_params=pltpu.CompilerParams(
            dimension_semantics=("parallel",),     # shards batch tiles on v7x
            vmem_limit_bytes=32 * 1024 * 1024,     # explicit (v5e default is 16 MiB)
        ),
    )(x1, x2, w1p, b1p, w2p, b2p, neg_mask, fcw1, fcw2, fcb)
    return out[:B, :N]


# ----------------------------------------------------------------------------
# Parameter init (random stand-in for load_glove; row 0 = <pad>, frozen)
# ----------------------------------------------------------------------------
def init_params(key, vocab_size, embed_dim, num_channels, kernel_sizes, num_classes):
    keys = jax.random.split(key, 3 + 4 * len(kernel_sizes))
    ki = iter(keys)

    emb = jax.random.normal(next(ki), (vocab_size, embed_dim), jnp.float32) * 0.1
    emb = emb.at[0].set(0.0)  # padding_idx row

    def conv_branch():
        ws, bs = [], []
        for k in kernel_sizes:
            # PyTorch Conv1d weight [C, E, K] stored here tap-major as [K, E, C].
            w = jax.random.normal(next(ki), (k, embed_dim, num_channels), jnp.float32)
            w = w * (1.0 / jnp.sqrt(embed_dim * k))
            b = jax.random.normal(next(ki), (num_channels,), jnp.float32) * 0.01
            ws.append(w)
            bs.append(b)
        return ws, bs

    convs1 = conv_branch()
    convs2 = conv_branch()

    fc_in = num_channels * len(kernel_sizes) * 2
    fc_w = jax.random.normal(next(ki), (fc_in, num_classes), jnp.float32)
    fc_w = fc_w * (1.0 / jnp.sqrt(fc_in))
    fc_b = jax.random.normal(next(ki), (num_classes,), jnp.float32) * 0.01

    return {"emb": emb, "convs1": convs1, "convs2": convs2, "fc_w": fc_w, "fc_b": fc_b}


# ----------------------------------------------------------------------------
# Pure-JAX reference (same bf16 operands / f32 accumulation as the kernel)
# ----------------------------------------------------------------------------
def _ref_forward(params, input1, input2):
    emb_bf = params["emb"].astype(jnp.bfloat16)

    def encode(branch, tokens):
        ws, bs = branch
        x = jnp.take(emb_bf, tokens, axis=0)                 # (B, L, E) bf16
        feats = []
        for w, b in zip(ws, bs):
            k = w.shape[0]
            wb = w.astype(jnp.bfloat16)
            l_out = x.shape[1] - k + 1
            acc = jnp.zeros((x.shape[0], l_out, w.shape[2]), jnp.float32)
            for dk in range(k):
                acc = acc + jnp.einsum("ble,ec->blc", x[:, dk:dk + l_out, :], wb[dk],
                                       preferred_element_type=jnp.float32)
            acc = jnp.maximum(acc + b[None, None, :], 0.0)
            feats.append(jnp.max(acc, axis=1))
        return jnp.concatenate(feats, axis=1)

    out1 = encode(params["convs1"], input1)
    out2 = encode(params["convs2"], input2)
    combined = jnp.concatenate([out1, out2], axis=1)
    return combined @ params["fc_w"] + params["fc_b"]


# ----------------------------------------------------------------------------
if __name__ == "__main__":
    B, L = 2, 16           # batch, sequence length (token ids)
    V, E = 50, 32          # vocab size, embed_dim
    C = 16                 # num_channels per conv
    KERNEL_SIZES = (3, 4, 5)
    NUM_CLASSES = 2

    key = jax.random.PRNGKey(0)
    k_params, k_tok1, k_tok2 = jax.random.split(key, 3)

    params = init_params(k_params, V, E, C, KERNEL_SIZES, NUM_CLASSES)
    input1 = jax.random.randint(k_tok1, (B, L), 0, V, dtype=jnp.int32)
    input2 = jax.random.randint(k_tok2, (B, L), 0, V, dtype=jnp.int32)

    fwd = jax.jit(dual_text_cnn_forward)
    logits = jax.block_until_ready(fwd(params, input1, input2))

    ref = _ref_forward(params, input1, input2)
    assert logits.shape == (B, NUM_CLASSES), logits.shape
    assert jnp.allclose(logits, ref, rtol=1e-4, atol=1e-4), (logits, ref)

    print("KERNEL_OK")
</pallas_src>

<mosaic_0001>
module attributes {stable_mosaic.version = 11 : i64} {
  func.func @kernel(%arg0: i32, %arg1: memref<8x24x32xbf16, #tpu.memory_space<vmem>>, %arg2: memref<8x24x32xbf16, #tpu.memory_space<vmem>>, %arg3: memref<160x48xbf16, #tpu.memory_space<vmem>>, %arg4: memref<1x48xf32, #tpu.memory_space<vmem>>, %arg5: memref<160x48xbf16, #tpu.memory_space<vmem>>, %arg6: memref<1x48xf32, #tpu.memory_space<vmem>>, %arg7: memref<16x48xf32, #tpu.memory_space<vmem>>, %arg8: memref<48x128xf32, #tpu.memory_space<vmem>>, %arg9: memref<48x128xf32, #tpu.memory_space<vmem>>, %arg10: memref<1x128xf32, #tpu.memory_space<vmem>>, %arg11: memref<8x128xf32, #tpu.memory_space<vmem>>) attributes {dimension_semantics = [#tpu.dimension_semantics<parallel>], iteration_bounds = array<i64: 1>, scalar_prefetch = 0 : i64, scratch_operands = 0 : i64, tpu.core_type = #tpu.core_type<tc>, window_params = [{transform_indices = @transform_0, window_bounds = array<i64: 8, 24, 32>}, {transform_indices = @transform_1, window_bounds = array<i64: 8, 24, 32>}, {pipeline_mode = #tpu.pipeline_mode<synchronous>, transform_indices = @transform_2, window_bounds = array<i64: 160, 48>}, {pipeline_mode = #tpu.pipeline_mode<synchronous>, transform_indices = @transform_3, window_bounds = array<i64: 1, 48>}, {pipeline_mode = #tpu.pipeline_mode<synchronous>, transform_indices = @transform_4, window_bounds = array<i64: 160, 48>}, {pipeline_mode = #tpu.pipeline_mode<synchronous>, transform_indices = @transform_5, window_bounds = array<i64: 1, 48>}, {pipeline_mode = #tpu.pipeline_mode<synchronous>, transform_indices = @transform_6, window_bounds = array<i64: 16, 48>}, {pipeline_mode = #tpu.pipeline_mode<synchronous>, transform_indices = @transform_7, window_bounds = array<i64: 48, 128>}, {pipeline_mode = #tpu.pipeline_mode<synchronous>, transform_indices = @transform_8, window_bounds = array<i64: 48, 128>}, {pipeline_mode = #tpu.pipeline_mode<synchronous>, transform_indices = @transform_9, window_bounds = array<i64: 1, 128>}, {transform_indices = @transform_10, window_bounds = array<i64: 8, 128>}]} {
    %c0 = arith.constant 0 : index
    %c0_0 = arith.constant 0 : index
    %0 = vector.load %arg7[%c0, %c0_0] : memref<16x48xf32, #tpu.memory_space<vmem>>, vector<16x48xf32>
    %c0_1 = arith.constant 0 : index
    %c0_2 = arith.constant 0 : index
    %c0_3 = arith.constant 0 : index
    %1 = vector.load %arg1[%c0_1, %c0_2, %c0_3] : memref<8x24x32xbf16, #tpu.memory_space<vmem>>, vector<8x24x32xbf16>
    %2 = arith.extf %1 : vector<8x24x32xbf16> to vector<8x24x32xf32>
    %3 = vector.extract_strided_slice %2 {offsets = [0, 0, 0], sizes = [8, 16, 32], strides = [1, 1, 1]} : vector<8x24x32xf32> to vector<8x16x32xf32>
    %4 = vector.extract_strided_slice %2 {offsets = [0, 1, 0], sizes = [8, 16, 32], strides = [1, 1, 1]} : vector<8x24x32xf32> to vector<8x16x32xf32>
    %5 = vector.extract_strided_slice %2 {offsets = [0, 2, 0], sizes = [8, 16, 32], strides = [1, 1, 1]} : vector<8x24x32xf32> to vector<8x16x32xf32>
    %6 = vector.extract_strided_slice %2 {offsets = [0, 3, 0], sizes = [8, 16, 32], strides = [1, 1, 1]} : vector<8x24x32xf32> to vector<8x16x32xf32>
    %7 = vector.extract_strided_slice %2 {offsets = [0, 4, 0], sizes = [8, 16, 32], strides = [1, 1, 1]} : vector<8x24x32xf32> to vector<8x16x32xf32>
    %8 = tpu.concatenate %3, %4, %5, %6, %7 in 2 : vector<8x16x32xf32>, vector<8x16x32xf32>, vector<8x16x32xf32>, vector<8x16x32xf32>, vector<8x16x32xf32> -> vector<8x16x160xf32>
    %9 = vector.shape_cast %8 : vector<8x16x160xf32> to vector<128x160xf32>
    %10 = arith.truncf %9 : vector<128x160xf32> to vector<128x160xbf16>
    %c0_4 = arith.constant 0 : index
    %c0_5 = arith.constant 0 : index
    %11 = vector.load %arg3[%c0_4, %c0_5] : memref<160x48xbf16, #tpu.memory_space<vmem>>, vector<160x48xbf16>
    %cst = arith.constant dense<0.000000e+00> : vector<128x48xf32>
    %12 = tpu.matmul %10, %11, %cst {dimension_numbers = #tpu.dot_dimension_numbers<[1], [0], [0], [1], [0, 0, 1, 1], [], []>} : vector<128x160xbf16>, vector<160x48xbf16>, vector<128x48xf32> -> vector<128x48xf32>
    %c0_6 = arith.constant 0 : index
    %c0_7 = arith.constant 0 : index
    %13 = vector.load %arg4[%c0_6, %c0_7] : memref<1x48xf32, #tpu.memory_space<vmem>>, vector<1x48xf32>
    %14 = vector.broadcast %13 : vector<1x48xf32> to vector<128x48xf32>
    %15 = arith.addf %12, %14 : vector<128x48xf32>
    %16 = vector.shape_cast %15 : vector<128x48xf32> to vector<8x16x48xf32>
    %17 = vector.shape_cast %0 : vector<16x48xf32> to vector<1x16x48xf32>
    %18 = vector.broadcast %17 : vector<1x16x48xf32> to vector<8x16x48xf32>
    %19 = arith.addf %16, %18 : vector<8x16x48xf32>
    %cst_8 = arith.constant dense<0xFF800000> : vector<8x48xf32>
    %20 = vector.multi_reduction <maximumf>, %19, %cst_8 [1] : vector<8x16x48xf32> to vector<8x48xf32>
    %cst_9 = arith.constant 0.000000e+00 : f32
    %21 = vector.broadcast %cst_9 : f32 to vector<8x48xf32>
    %22 = arith.maximumf %20, %21 : vector<8x48xf32>
    %c0_10 = arith.constant 0 : index
    %c0_11 = arith.constant 0 : index
    %c0_12 = arith.constant 0 : index
    %23 = vector.load %arg2[%c0_10, %c0_11, %c0_12] : memref<8x24x32xbf16, #tpu.memory_space<vmem>>, vector<8x24x32xbf16>
    %24 = arith.extf %23 : vector<8x24x32xbf16> to vector<8x24x32xf32>
    %25 = vector.extract_strided_slice %24 {offsets = [0, 0, 0], sizes = [8, 16, 32], strides = [1, 1, 1]} : vector<8x24x32xf32> to vector<8x16x32xf32>
    %26 = vector.extract_strided_slice %24 {offsets = [0, 1, 0], sizes = [8, 16, 32], strides = [1, 1, 1]} : vector<8x24x32xf32> to vector<8x16x32xf32>
    %27 = vector.extract_strided_slice %24 {offsets = [0, 2, 0], sizes = [8, 16, 32], strides = [1, 1, 1]} : vector<8x24x32xf32> to vector<8x16x32xf32>
    %28 = vector.extract_strided_slice %24 {offsets = [0, 3, 0], sizes = [8, 16, 32], strides = [1, 1, 1]} : vector<8x24x32xf32> to vector<8x16x32xf32>
    %29 = vector.extract_strided_slice %24 {offsets = [0, 4, 0], sizes = [8, 16, 32], strides = [1, 1, 1]} : vector<8x24x32xf32> to vector<8x16x32xf32>
    %30 = tpu.concatenate %25, %26, %27, %28, %29 in 2 : vector<8x16x32xf32>, vector<8x16x32xf32>, vector<8x16x32xf32>, vector<8x16x32xf32>, vector<8x16x32xf32> -> vector<8x16x160xf32>
    %31 = vector.shape_cast %30 : vector<8x16x160xf32> to vector<128x160xf32>
    %32 = arith.truncf %31 : vector<128x160xf32> to vector<128x160xbf16>
    %c0_13 = arith.constant 0 : index
    %c0_14 = arith.constant 0 : index
    %33 = vector.load %arg5[%c0_13, %c0_14] : memref<160x48xbf16, #tpu.memory_space<vmem>>, vector<160x48xbf16>
    %cst_15 = arith.constant dense<0.000000e+00> : vector<128x48xf32>
    %34 = tpu.matmul %32, %33, %cst_15 {dimension_numbers = #tpu.dot_dimension_numbers<[1], [0], [0], [1], [0, 0, 1, 1], [], []>} : vector<128x160xbf16>, vector<160x48xbf16>, vector<128x48xf32> -> vector<128x48xf32>
    %c0_16 = arith.constant 0 : index
    %c0_17 = arith.constant 0 : index
    %35 = vector.load %arg6[%c0_16, %c0_17] : memref<1x48xf32, #tpu.memory_space<vmem>>, vector<1x48xf32>
    %36 = vector.broadcast %35 : vector<1x48xf32> to vector<128x48xf32>
    %37 = arith.addf %34, %36 : vector<128x48xf32>
    %38 = vector.shape_cast %37 : vector<128x48xf32> to vector<8x16x48xf32>
    %39 = vector.shape_cast %0 : vector<16x48xf32> to vector<1x16x48xf32>
    %40 = vector.broadcast %39 : vector<1x16x48xf32> to vector<8x16x48xf32>
    %41 = arith.addf %38, %40 : vector<8x16x48xf32>
    %cst_18 = arith.constant dense<0xFF800000> : vector<8x48xf32>
    %42 = vector.multi_reduction <maximumf>, %41, %cst_18 [1] : vector<8x16x48xf32> to vector<8x48xf32>
    %cst_19 = arith.constant 0.000000e+00 : f32
    %43 = vector.broadcast %cst_19 : f32 to vector<8x48xf32>
    %44 = arith.maximumf %42, %43 : vector<8x48xf32>
    %c0_20 = arith.constant 0 : index
    %c0_21 = arith.constant 0 : index
    %45 = vector.load %arg8[%c0_20, %c0_21] : memref<48x128xf32, #tpu.memory_space<vmem>>, vector<48x128xf32>
    %cst_22 = arith.constant dense<0.000000e+00> : vector<8x128xf32>
    %46 = tpu.matmul %22, %45, %cst_22 {dimension_numbers = #tpu.dot_dimension_numbers<[1], [0], [0], [1], [0, 0, 1, 1], [], []>} : vector<8x48xf32>, vector<48x128xf32>, vector<8x128xf32> -> vector<8x128xf32>
    %c0_23 = arith.constant 0 : index
    %c0_24 = arith.constant 0 : index
    %47 = vector.load %arg9[%c0_23, %c0_24] : memref<48x128xf32, #tpu.memory_space<vmem>>, vector<48x128xf32>
    %cst_25 = arith.constant dense<0.000000e+00> : vector<8x128xf32>
    %48 = tpu.matmul %44, %47, %cst_25 {dimension_numbers = #tpu.dot_dimension_numbers<[1], [0], [0], [1], [0, 0, 1, 1], [], []>} : vector<8x48xf32>, vector<48x128xf32>, vector<8x128xf32> -> vector<8x128xf32>
    %49 = arith.addf %46, %48 : vector<8x128xf32>
    %c0_26 = arith.constant 0 : index
    %c0_27 = arith.constant 0 : index
    %50 = vector.load %arg10[%c0_26, %c0_27] : memref<1x128xf32, #tpu.memory_space<vmem>>, vector<1x128xf32>
    %51 = vector.broadcast %50 : vector<1x128xf32> to vector<8x128xf32>
    %52 = arith.addf %49, %51 : vector<8x128xf32>
    %c0_28 = arith.constant 0 : index
    %c0_29 = arith.constant 0 : index
    %53 = vector.load %arg11[%c0_28, %c0_29] : memref<8x128xf32, #tpu.memory_space<vmem>>, vector<8x128xf32>
    tpu.vector_store %arg11[%c0_28, %c0_29], %52 {strides = array<i32>} : memref<8x128xf32, #tpu.memory_space<vmem>>, vector<8x128xf32>,
    return
  }
  func.func @transform_0(%arg0: i32) -> (i32, i32, i32) {
    %c0_i32 = arith.constant 0 : i32
    %c0_i32_0 = arith.constant 0 : i32
    %c0_i32_1 = arith.constant 0 : i32
    return %arg0, %c0_i32, %c0_i32_0 : i32, i32, i32
  }
  func.func @transform_1(%arg0: i32) -> (i32, i32, i32) {
    %c0_i32 = arith.constant 0 : i32
    %c0_i32_0 = arith.constant 0 : i32
    %c0_i32_1 = arith.constant 0 : i32
    return %arg0, %c0_i32, %c0_i32_0 : i32, i32, i32
  }
  func.func @transform_2(%arg0: i32) -> (i32, i32) {
    %c0_i32 = arith.constant 0 : i32
    %c0_i32_0 = arith.constant 0 : i32
    %c0_i32_1 = arith.constant 0 : i32
    return %c0_i32, %c0_i32_0 : i32, i32
  }
  func.func @transform_3(%arg0: i32) -> (i32, i32) {
    %c0_i32 = arith.constant 0 : i32
    %c0_i32_0 = arith.constant 0 : i32
    %c0_i32_1 = arith.constant 0 : i32
    return %c0_i32, %c0_i32_0 : i32, i32
  }
  func.func @transform_4(%arg0: i32) -> (i32, i32) {
    %c0_i32 = arith.constant 0 : i32
    %c0_i32_0 = arith.constant 0 : i32
    %c0_i32_1 = arith.constant 0 : i32
    return %c0_i32, %c0_i32_0 : i32, i32
  }
  func.func @transform_5(%arg0: i32) -> (i32, i32) {
    %c0_i32 = arith.constant 0 : i32
    %c0_i32_0 = arith.constant 0 : i32
    %c0_i32_1 = arith.constant 0 : i32
    return %c0_i32, %c0_i32_0 : i32, i32
  }
  func.func @transform_6(%arg0: i32) -> (i32, i32) {
    %c0_i32 = arith.constant 0 : i32
    %c0_i32_0 = arith.constant 0 : i32
    %c0_i32_1 = arith.constant 0 : i32
    return %c0_i32, %c0_i32_0 : i32, i32
  }
  func.func @transform_7(%arg0: i32) -> (i32, i32) {
    %c0_i32 = arith.constant 0 : i32
    %c0_i32_0 = arith.constant 0 : i32
    %c0_i32_1 = arith.constant 0 : i32
    return %c0_i32, %c0_i32_0 : i32, i32
  }
  func.func @transform_8(%arg0: i32) -> (i32, i32) {
    %c0_i32 = arith.constant 0 : i32
    %c0_i32_0 = arith.constant 0 : i32
    %c0_i32_1 = arith.constant 0 : i32
    return %c0_i32, %c0_i32_0 : i32, i32
  }
  func.func @transform_9(%arg0: i32) -> (i32, i32) {
    %c0_i32 = arith.constant 0 : i32
    %c0_i32_0 = arith.constant 0 : i32
    %c0_i32_1 = arith.constant 0 : i32
    return %c0_i32, %c0_i32_0 : i32, i32
  }
  func.func @transform_10(%arg0: i32) -> (i32, i32) {
    %c0_i32 = arith.constant 0 : i32
    %c0_i32_0 = arith.constant 0 : i32
    return %arg0, %c0_i32 : i32, i32
  }
}

</mosaic_0001>

<llo_original>
// kernel: dual_text_cnn_forward.1
$region0: #{dual_text_cnn_forward.1}
  #allocation0 [shape = 'u32[]', space=smem, size = 0x4, offset = 0x4, fixed_abs, tag = 'smem constant byte address 0x4 - core index']
  #allocation1 [shape = 'u32[144,128]{1,0:T(1,128)}', space=vmem, size = 0x12000, scoped, tag = 'internal scratch']
  %s0 = inlined_call_operand.vmem [shape: bf16[8,24,32], index: 0, kind: input, shape index: {}]
  %s1 = inlined_call_operand.vmem [shape: bf16[8,24,32], index: 1, kind: input, shape index: {}]
  %s2 = inlined_call_operand.vmem [shape: bf16[160,48], index: 2, kind: input, shape index: {}]
  %s3 = inlined_call_operand.vmem [shape: f32[1,48], index: 3, kind: input, shape index: {}]
  %s4 = inlined_call_operand.vmem [shape: bf16[160,48], index: 4, kind: input, shape index: {}]
  %s5 = inlined_call_operand.vmem [shape: f32[1,48], index: 5, kind: input, shape index: {}]
  %s6 = inlined_call_operand.vmem [shape: f32[16,48], index: 6, kind: input, shape index: {}]
  %s7 = inlined_call_operand.vmem [shape: f32[48,128], index: 7, kind: input, shape index: {}]
  %s8 = inlined_call_operand.vmem [shape: f32[48,128], index: 8, kind: input, shape index: {}]
  %s9 = inlined_call_operand.vmem [shape: f32[1,128], index: 9, kind: input, shape index: {}]
  %s10 = inlined_call_operand.vmem [shape: f32[8,128], index: 10, kind: output, shape index: {}]
  %s11 = sld [smem:[#allocation0]]
  $region50: #{dual_text_cnn_forward.1} parent=0
    _
  %s13 = ssub.s32 1, %s11
  %s14 = scalar_select 0, %s13, %s11
  // Predicated region
  $region2: #{dual_text_cnn_forward.1} parent=0 // pred_check
    _
  $region3: #{dual_text_cnn_forward.1} parent=0 // pred_check_branch
    %16 = sbr.rel (0) target = $region5
  $region4: #{dual_text_cnn_forward.1} parent=0 // pred_region
    _
  $region5: #{dual_text_cnn_forward.1} parent=0 // pred_fallthru
    _
  // Predicated region
  $region6: #{dual_text_cnn_forward.1} parent=0 // pred_check
    _
  $region7: #{dual_text_cnn_forward.1} parent=0 // pred_check_branch
    %18 = sbr.rel (0) target = $region9
  $region8: #{dual_text_cnn_forward.1} parent=0 // pred_region
    _
  $region9: #{dual_text_cnn_forward.1} parent=0 // pred_fallthru
    _
  // Predicated region
  $region10: #{dual_text_cnn_forward.1} parent=0 // pred_check
    _
  $region11: #{dual_text_cnn_forward.1} parent=0 // pred_check_branch
    %20 = sbr.rel (0) target = $region13
  $region12: #{dual_text_cnn_forward.1} parent=0 // pred_region
    _
  $region13: #{dual_text_cnn_forward.1} parent=0 // pred_fallthru
    _
  // Predicated region
  $region14: #{dual_text_cnn_forward.1} parent=0 // pred_check
    _
  $region15: #{dual_text_cnn_forward.1} parent=0 // pred_check_branch
    %22 = sbr.rel (0) target = $region17
  $region16: #{dual_text_cnn_forward.1} parent=0 // pred_region
    _
  $region17: #{dual_text_cnn_forward.1} parent=0 // pred_fallthru
    _
  // Predicated region
  $region18: #{dual_text_cnn_forward.1} parent=0 // pred_check
    _
  $region19: #{dual_text_cnn_forward.1} parent=0 // pred_check_branch
    %24 = sbr.rel (0) target = $region21
  $region20: #{dual_text_cnn_forward.1} parent=0 // pred_region
    _
  $region21: #{dual_text_cnn_forward.1} parent=0 // pred_fallthru
    _
  // Predicated region
  $region22: #{dual_text_cnn_forward.1} parent=0 // pred_check
    _
  $region23: #{dual_text_cnn_forward.1} parent=0 // pred_check_branch
    %26 = sbr.rel (0) target = $region25
  $region24: #{dual_text_cnn_forward.1} parent=0 // pred_region
    _
  $region25: #{dual_text_cnn_forward.1} parent=0 // pred_fallthru
    _
  // Predicated region
  $region26: #{dual_text_cnn_forward.1} parent=0 // pred_check
    _
  $region27: #{dual_text_cnn_forward.1} parent=0 // pred_check_branch
    %28 = sbr.rel (0) target = $region29
  $region28: #{dual_text_cnn_forward.1} parent=0 // pred_region
    _
  $region29: #{dual_text_cnn_forward.1} parent=0 // pred_fallthru
    _
  // Predicated region
  $region30: #{dual_text_cnn_forward.1} parent=0 // pred_check
    _
  $region31: #{dual_text_cnn_forward.1} parent=0 // pred_check_branch
    %30 = sbr.rel (0) target = $region33
  $region32: #{dual_text_cnn_forward.1} parent=0 // pred_region
    _
  $region33: #{dual_text_cnn_forward.1} parent=0 // pred_fallthru
    _
  // Predicated region
  $region34: #{dual_text_cnn_forward.1} parent=0 // pred_check
    _
  $region35: #{dual_text_cnn_forward.1} parent=0 // pred_check_branch
    %32 = sbr.rel (0) target = $region37
  $region36: #{dual_text_cnn_forward.1} parent=0 // pred_region
    _
  $region37: #{dual_text_cnn_forward.1} parent=0 // pred_fallthru
    _
  // Predicated region
  $region38: #{dual_text_cnn_forward.1} parent=0 // pred_check
    _
  $region39: #{dual_text_cnn_forward.1} parent=0 // pred_check_branch
    %34 = sbr.rel (0) target = $region41
  $region40: #{dual_text_cnn_forward.1} parent=0 // pred_region
    _
  $region41: #{dual_text_cnn_forward.1} parent=0 // pred_fallthru
    _
  %v36 = vld [vmem:[%s6] sm:$0xff]
  %v37 = vld [vmem:[%s6 + $0x8] sm:$0xff]
  %v38 = vld [vmem:[%s0] sm:$0xf]
  %v39 = vld [vmem:[%s0 + $0x4] sm:$0xf]
  %v40 = vld [vmem:[%s0 + $0x8] sm:$0xf]
  %v41 = vld [vmem:[%s0 + $0xc] sm:$0xf]
  %v42 = vld [vmem:[%s0 + $0x10] sm:$0xf]
  %v43 = vld [vmem:[%s0 + $0x14] sm:$0xf]
  %v44 = vld [vmem:[%s0 + $0x18] sm:$0xf]
  %v45 = vld [vmem:[%s0 + $0x1c] sm:$0xf]
  %v46 = vld [vmem:[%s0 + $0x20] sm:$0xf]
  %v47 = vld [vmem:[%s0 + $0x24] sm:$0xf]
  %v48 = vld [vmem:[%s0 + $0x28] sm:$0xf]
  %v49 = vld [vmem:[%s0 + $0x2c] sm:$0xf]
  %v50 = vld [vmem:[%s0 + $0x30] sm:$0xf]
  %v51 = vld [vmem:[%s0 + $0x34] sm:$0xf]
  %v52 = vld [vmem:[%s0 + $0x38] sm:$0xf]
  %v53 = vld [vmem:[%s0 + $0x3c] sm:$0xf]
  %v54 = vld [vmem:[%s0 + $0x40] sm:$0xf]
  %v55 = vld [vmem:[%s0 + $0x44] sm:$0xf]
  %v56 = vld [vmem:[%s0 + $0x48] sm:$0xf]
  %v57 = vld [vmem:[%s0 + $0x4c] sm:$0xf]
  %v58 = vld [vmem:[%s0 + $0x50] sm:$0xf]
  %v59 = vld [vmem:[%s0 + $0x54] sm:$0xf]
  %v60 = vld [vmem:[%s0 + $0x58] sm:$0xf]
  %v61 = vld [vmem:[%s0 + $0x5c] sm:$0xf]
  %v62 = vunpack.c.l.bf16 %v38
  %v63 = vunpack.c.l.bf16 %v39
  %v64 = vunpack.c.l.bf16 %v40
  %v65 = vunpack.c.l.bf16 %v41
  %v66 = vunpack.c.l.bf16 %v42
  %v67 = vunpack.c.l.bf16 %v43
  %v68 = vunpack.c.l.bf16 %v44
  %v69 = vunpack.c.l.bf16 %v45
  %v70 = vunpack.c.l.bf16 %v46
  %v71 = vunpack.c.l.bf16 %v47
  %v72 = vunpack.c.l.bf16 %v48
  %v73 = vunpack.c.l.bf16 %v49
  %v74 = vunpack.c.l.bf16 %v50
  %v75 = vunpack.c.l.bf16 %v51
  %v76 = vunpack.c.l.bf16 %v52
  %v77 = vunpack.c.l.bf16 %v53
  %v78 = vunpack.c.l.bf16 %v54
  %v79 = vunpack.c.l.bf16 %v55
  %v80 = vunpack.c.l.bf16 %v56
  %v81 = vunpack.c.l.bf16 %v57
  %v82 = vunpack.c.l.bf16 %v58
  %v83 = vunpack.c.l.bf16 %v59
  %v84 = vunpack.c.l.bf16 %v60
  %v85 = vunpack.c.l.bf16 %v61
  %vm110 = vcmask 1046528
  %v111 = vrot.slane %v62, 1
  %v112 = vrot.slane %v63, 1
  %v113 = vsel %vm110, %v111, %v112
  %v114 = vrot.slane %v64, 1
  %v115 = vsel %vm110, %v112, %v114
  %v116 = vrot.slane %v65, 1
  %v117 = vrot.slane %v66, 1
  %v118 = vsel %vm110, %v116, %v117
  %v119 = vrot.slane %v67, 1
  %v120 = vsel %vm110, %v117, %v119
  %v121 = vrot.slane %v68, 1
  %v122 = vrot.slane %v69, 1
  %v123 = vsel %vm110, %v121, %v122
  %v124 = vrot.slane %v70, 1
  %v125 = vsel %vm110, %v122, %v124
  %v126 = vrot.slane %v71, 1
  %v127 = vrot.slane %v72, 1
  %v128 = vsel %vm110, %v126, %v127
  %v129 = vrot.slane %v73, 1
  %v130 = vsel %vm110, %v127, %v129
  %v131 = vrot.slane %v74, 1
  %v132 = vrot.slane %v75, 1
  %v133 = vsel %vm110, %v131, %v132
  %v134 = vrot.slane %v76, 1
  %v135 = vsel %vm110, %v132, %v134
  %v136 = vrot.slane %v77, 1
  %v137 = vrot.slane %v78, 1
  %v138 = vsel %vm110, %v136, %v137
  %v139 = vrot.slane %v79, 1
  %v140 = vsel %vm110, %v137, %v139
  %v141 = vrot.slane %v80, 1
  %v142 = vrot.slane %v81, 1
  %v143 = vsel %vm110, %v141, %v142
  %v144 = vrot.slane %v82, 1
  %v145 = vsel %vm110, %v142, %v144
  %v146 = vrot.slane %v83, 1
  %v147 = vrot.slane %v84, 1
  %v148 = vsel %vm110, %v146, %v147
  %v149 = vrot.slane %v85, 1
  %v150 = vsel %vm110, %v147, %v149
  %151 = vrot.lane.b32.xlu0 %v113, 32
  %v152 = vpop.permute.xlu0 %151
  %153 = vrot.lane.b32.xlu0 %v115, 32
  %v154 = vpop.permute.xlu0 %153
  %155 = vrot.lane.b32.xlu0 %v118, 32
  %v156 = vpop.permute.xlu0 %155
  %157 = vrot.lane.b32.xlu0 %v120, 32
  %v158 = vpop.permute.xlu0 %157
  %159 = vrot.lane.b32.xlu0 %v123, 32
  %v160 = vpop.permute.xlu0 %159
  %161 = vrot.lane.b32.xlu0 %v125, 32
  %v162 = vpop.permute.xlu0 %161
  %163 = vrot.lane.b32.xlu0 %v128, 32
  %v164 = vpop.permute.xlu0 %163
  %165 = vrot.lane.b32.xlu0 %v130, 32
  %v166 = vpop.permute.xlu0 %165
  %167 = vrot.lane.b32.xlu0 %v133, 32
  %v168 = vpop.permute.xlu0 %167
  %169 = vrot.lane.b32.xlu0 %v135, 32
  %v170 = vpop.permute.xlu0 %169
  %171 = vrot.lane.b32.xlu0 %v138, 32
  %v172 = vpop.permute.xlu0 %171
  %173 = vrot.lane.b32.xlu0 %v140, 32
  %v174 = vpop.permute.xlu0 %173
  %175 = vrot.lane.b32.xlu0 %v143, 32
  %v176 = vpop.permute.xlu0 %175
  %177 = vrot.lane.b32.xlu0 %v145, 32
  %v178 = vpop.permute.xlu0 %177
  %179 = vrot.lane.b32.xlu0 %v148, 32
  %v180 = vpop.permute.xlu0 %179
  %181 = vrot.lane.b32.xlu0 %v150, 32
  %v182 = vpop.permute.xlu0 %181
  %vm199 = vcmask 1045504
  %v200 = vrot.slane %v62, 2
  %v201 = vrot.slane %v63, 2
  %v202 = vsel %vm199, %v200, %v201
  %v203 = vrot.slane %v64, 2
  %v204 = vsel %vm199, %v201, %v203
  %v205 = vrot.slane %v65, 2
  %v206 = vrot.slane %v66, 2
  %v207 = vsel %vm199, %v205, %v206
  %v208 = vrot.slane %v67, 2
  %v209 = vsel %vm199, %v206, %v208
  %v210 = vrot.slane %v68, 2
  %v211 = vrot.slane %v69, 2
  %v212 = vsel %vm199, %v210, %v211
  %v213 = vrot.slane %v70, 2
  %v214 = vsel %vm199, %v211, %v213
  %v215 = vrot.slane %v71, 2
  %v216 = vrot.slane %v72, 2
  %v217 = vsel %vm199, %v215, %v216
  %v218 = vrot.slane %v73, 2
  %v219 = vsel %vm199, %v216, %v218
  %v220 = vrot.slane %v74, 2
  %v221 = vrot.slane %v75, 2
  %v222 = vsel %vm199, %v220, %v221
  %v223 = vrot.slane %v76, 2
  %v224 = vsel %vm199, %v221, %v223
  %v225 = vrot.slane %v77, 2
  %v226 = vrot.slane %v78, 2
  %v227 = vsel %vm199, %v225, %v226
  %v228 = vrot.slane %v79, 2
  %v229 = vsel %vm199, %v226, %v228
  %v230 = vrot.slane %v80, 2
  %v231 = vrot.slane %v81, 2
  %v232 = vsel %vm199, %v230, %v231
  %v233 = vrot.slane %v82, 2
  %v234 = vsel %vm199, %v231, %v233
  %v235 = vrot.slane %v83, 2
  %v236 = vrot.slane %v84, 2
  %v237 = vsel %vm199, %v235, %v236
  %v238 = vrot.slane %v85, 2
  %v239 = vsel %vm199, %v236, %v238
  %240 = vrot.lane.b32.xlu0 %v202, 64
  %v241 = vpop.permute.xlu0 %240
  %242 = vrot.lane.b32.xlu0 %v204, 64
  %v243 = vpop.permute.xlu0 %242
  %244 = vrot.lane.b32.xlu0 %v207, 64
  %v245 = vpop.permute.xlu0 %244
  %246 = vrot.lane.b32.xlu0 %v209, 64
  %v247 = vpop.permute.xlu0 %246
  %248 = vrot.lane.b32.xlu0 %v212, 64
  %v249 = vpop.permute.xlu0 %248
  %250 = vrot.lane.b32.xlu0 %v214, 64
  %v251 = vpop.permute.xlu0 %250
  %252 = vrot.lane.b32.xlu0 %v217, 64
  %v253 = vpop.permute.xlu0 %252
  %254 = vrot.lane.b32.xlu0 %v219, 64
  %v255 = vpop.permute.xlu0 %254
  %256 = vrot.lane.b32.xlu0 %v222, 64
  %v257 = vpop.permute.xlu0 %256
  %258 = vrot.lane.b32.xlu0 %v224, 64
  %v259 = vpop.permute.xlu0 %258
  %260 = vrot.lane.b32.xlu0 %v227, 64
  %v261 = vpop.permute.xlu0 %260
  %262 = vrot.lane.b32.xlu0 %v229, 64
  %v263 = vpop.permute.xlu0 %262
  %264 = vrot.lane.b32.xlu0 %v232, 64
  %v265 = vpop.permute.xlu0 %264
  %266 = vrot.lane.b32.xlu0 %v234, 64
  %v267 = vpop.permute.xlu0 %266
  %268 = vrot.lane.b32.xlu0 %v237, 64
  %v269 = vpop.permute.xlu0 %268
  %270 = vrot.lane.b32.xlu0 %v239, 64
  %v271 = vpop.permute.xlu0 %270
  %vm288 = vcmask 1044480
  %v289 = vrot.slane %v62, 3
  %v290 = vrot.slane %v63, 3
  %v291 = vsel %vm288, %v289, %v290
  %v292 = vrot.slane %v64, 3
  %v293 = vsel %vm288, %v290, %v292
  %v294 = vrot.slane %v65, 3
  %v295 = vrot.slane %v66, 3
  %v296 = vsel %vm288, %v294, %v295
  %v297 = vrot.slane %v67, 3
  %v298 = vsel %vm288, %v295, %v297
  %v299 = vrot.slane %v68, 3
  %v300 = vrot.slane %v69, 3
  %v301 = vsel %vm288, %v299, %v300
  %v302 = vrot.slane %v70, 3
  %v303 = vsel %vm288, %v300, %v302
  %v304 = vrot.slane %v71, 3
  %v305 = vrot.slane %v72, 3
  %v306 = vsel %vm288, %v304, %v305
  %v307 = vrot.slane %v73, 3
  %v308 = vsel %vm288, %v305, %v307
  %v309 = vrot.slane %v74, 3
  %v310 = vrot.slane %v75, 3
  %v311 = vsel %vm288, %v309, %v310
  %v312 = vrot.slane %v76, 3
  %v313 = vsel %vm288, %v310, %v312
  %v314 = vrot.slane %v77, 3
  %v315 = vrot.slane %v78, 3
  %v316 = vsel %vm288, %v314, %v315
  %v317 = vrot.slane %v79, 3
  %v318 = vsel %vm288, %v315, %v317
  %v319 = vrot.slane %v80, 3
  %v320 = vrot.slane %v81, 3
  %v321 = vsel %vm288, %v319, %v320
  %v322 = vrot.slane %v82, 3
  %v323 = vsel %vm288, %v320, %v322
  %v324 = vrot.slane %v83, 3
  %v325 = vrot.slane %v84, 3
  %v326 = vsel %vm288, %v324, %v325
  %v327 = vrot.slane %v85, 3
  %v328 = vsel %vm288, %v325, %v327
  %329 = vrot.lane.b32.xlu0 %v291, 96
  %v330 = vpop.permute.xlu0 %329
  %331 = vrot.lane.b32.xlu0 %v293, 96
  %v332 = vpop.permute.xlu0 %331
  %333 = vrot.lane.b32.xlu0 %v296, 96
  %v334 = vpop.permute.xlu0 %333
  %335 = vrot.lane.b32.xlu0 %v298, 96
  %v336 = vpop.permute.xlu0 %335
  %337 = vrot.lane.b32.xlu0 %v301, 96
  %v338 = vpop.permute.xlu0 %337
  %339 = vrot.lane.b32.xlu0 %v303, 96
  %v340 = vpop.permute.xlu0 %339
  %341 = vrot.lane.b32.xlu0 %v306, 96
  %v342 = vpop.permute.xlu0 %341
  %343 = vrot.lane.b32.xlu0 %v308, 96
  %v344 = vpop.permute.xlu0 %343
  %345 = vrot.lane.b32.xlu0 %v311, 96
  %v346 = vpop.permute.xlu0 %345
  %347 = vrot.lane.b32.xlu0 %v313, 96
  %v348 = vpop.permute.xlu0 %347
  %349 = vrot.lane.b32.xlu0 %v316, 96
  %v350 = vpop.permute.xlu0 %349
  %351 = vrot.lane.b32.xlu0 %v318, 96
  %v352 = vpop.permute.xlu0 %351
  %353 = vrot.lane.b32.xlu0 %v321, 96
  %v354 = vpop.permute.xlu0 %353
  %355 = vrot.lane.b32.xlu0 %v323, 96
  %v356 = vpop.permute.xlu0 %355
  %357 = vrot.lane.b32.xlu0 %v326, 96
  %v358 = vpop.permute.xlu0 %357
  %359 = vrot.lane.b32.xlu0 %v328, 96
  %v360 = vpop.permute.xlu0 %359
  %vm377 = vcmask 1043456
  %v378 = vrot.slane %v62, 4
  %v379 = vrot.slane %v63, 4
  %v380 = vsel %vm377, %v378, %v379
  %v381 = vrot.slane %v64, 4
  %v382 = vsel %vm377, %v379, %v381
  %v383 = vrot.slane %v65, 4
  %v384 = vrot.slane %v66, 4
  %v385 = vsel %vm377, %v383, %v384
  %v386 = vrot.slane %v67, 4
  %v387 = vsel %vm377, %v384, %v386
  %v388 = vrot.slane %v68, 4
  %v389 = vrot.slane %v69, 4
  %v390 = vsel %vm377, %v388, %v389
  %v391 = vrot.slane %v70, 4
  %v392 = vsel %vm377, %v389, %v391
  %v393 = vrot.slane %v71, 4
  %v394 = vrot.slane %v72, 4
  %v395 = vsel %vm377, %v393, %v394
  %v396 = vrot.slane %v73, 4
  %v397 = vsel %vm377, %v394, %v396
  %v398 = vrot.slane %v74, 4
  %v399 = vrot.slane %v75, 4
  %v400 = vsel %vm377, %v398, %v399
  %v401 = vrot.slane %v76, 4
  %v402 = vsel %vm377, %v399, %v401
  %v403 = vrot.slane %v77, 4
  %v404 = vrot.slane %v78, 4
  %v405 = vsel %vm377, %v403, %v404
  %v406 = vrot.slane %v79, 4
  %v407 = vsel %vm377, %v404, %v406
  %v408 = vrot.slane %v80, 4
  %v409 = vrot.slane %v81, 4
  %v410 = vsel %vm377, %v408, %v409
  %v411 = vrot.slane %v82, 4
  %v412 = vsel %vm377, %v409, %v411
  %v413 = vrot.slane %v83, 4
  %v414 = vrot.slane %v84, 4
  %v415 = vsel %vm377, %v413, %v414
  %v416 = vrot.slane %v85, 4
  %v417 = vsel %vm377, %v414, %v416
  %vm434 = vcmask 261120
  %v435 = vsel %vm434, %v62, %v152
  %v436 = vsel %vm434, %v63, %v154
  %v437 = vsel %vm434, %v65, %v156
  %v438 = vsel %vm434, %v66, %v158
  %v439 = vsel %vm434, %v68, %v160
  %v440 = vsel %vm434, %v69, %v162
  %v441 = vsel %vm434, %v71, %v164
  %v442 = vsel %vm434, %v72, %v166
  %v443 = vsel %vm434, %v74, %v168
  %v444 = vsel %vm434, %v75, %v170
  %v445 = vsel %vm434, %v77, %v172
  %v446 = vsel %vm434, %v78, %v174
  %v447 = vsel %vm434, %v80, %v176
  %v448 = vsel %vm434, %v81, %v178
  %v449 = vsel %vm434, %v83, %v180
  %v450 = vsel %vm434, %v84, %v182
  %vm451 = vcmask 523264
  %v452 = vsel %vm451, %v435, %v241
  %v453 = vsel %vm451, %v436, %v243
  %v454 = vsel %vm451, %v437, %v245
  %v455 = vsel %vm451, %v438, %v247
  %v456 = vsel %vm451, %v439, %v249
  %v457 = vsel %vm451, %v440, %v251
  %v458 = vsel %vm451, %v441, %v253
  %v459 = vsel %vm451, %v442, %v255
  %v460 = vsel %vm451, %v443, %v257
  %v461 = vsel %vm451, %v444, %v259
  %v462 = vsel %vm451, %v445, %v261
  %v463 = vsel %vm451, %v446, %v263
  %v464 = vsel %vm451, %v447, %v265
  %v465 = vsel %vm451, %v448, %v267
  %v466 = vsel %vm451, %v449, %v269
  %v467 = vsel %vm451, %v450, %v271
  %vm468 = vcmask 785408
  %v469 = vsel %vm468, %v452, %v330
  %v470 = vsel %vm468, %v453, %v332
  %v471 = vsel %vm468, %v454, %v334
  %v472 = vsel %vm468, %v455, %v336
  %v473 = vsel %vm468, %v456, %v338
  %v474 = vsel %vm468, %v457, %v340
  %v475 = vsel %vm468, %v458, %v342
  %v476 = vsel %vm468, %v459, %v344
  %v477 = vsel %vm468, %v460, %v346
  %v478 = vsel %vm468, %v461, %v348
  %v479 = vsel %vm468, %v462, %v350
  %v480 = vsel %vm468, %v463, %v352
  %v481 = vsel %vm468, %v464, %v354
  %v482 = vsel %vm468, %v465, %v356
  %v483 = vsel %vm468, %v466, %v358
  %v484 = vsel %vm468, %v467, %v360
  %v485 = vpack.c.bf16 %v470, %v469
  %v486 = vpack.c.bf16 %v382, %v380
  %v487 = vpack.c.bf16 %v472, %v471
  %v488 = vpack.c.bf16 %v387, %v385
  %v489 = vpack.c.bf16 %v474, %v473
  %v490 = vpack.c.bf16 %v392, %v390
  %v491 = vpack.c.bf16 %v476, %v475
  %v492 = vpack.c.bf16 %v397, %v395
  %v493 = vpack.c.bf16 %v478, %v477
  %v494 = vpack.c.bf16 %v402, %v400
  %v495 = vpack.c.bf16 %v480, %v479
  %v496 = vpack.c.bf16 %v407, %v405
  %v497 = vpack.c.bf16 %v482, %v481
  %v498 = vpack.c.bf16 %v412, %v410
  %v499 = vpack.c.bf16 %v484, %v483
  %v500 = vpack.c.bf16 %v417, %v415
  %v501 = vld [vmem:[%s2] sm:$0xf]
  %v502 = vld [vmem:[%s2 + $0x4] sm:$0xf]
  %v503 = vld [vmem:[%s2 + $0x8] sm:$0xf]
  %v504 = vld [vmem:[%s2 + $0xc] sm:$0xf]
  %v505 = vld [vmem:[%s2 + $0x10] sm:$0xf]
  %v506 = vld [vmem:[%s2 + $0x14] sm:$0xf]
  %v507 = vld [vmem:[%s2 + $0x18] sm:$0xf]
  %v508 = vld [vmem:[%s2 + $0x1c] sm:$0xf]
  %v509 = vld [vmem:[%s2 + $0x20] sm:$0xf]
  %v510 = vld [vmem:[%s2 + $0x24] sm:$0xf]
  %v511 = vld [vmem:[%s2 + $0x28] sm:$0xf]
  %v512 = vld [vmem:[%s2 + $0x2c] sm:$0xf]
  %v513 = vld [vmem:[%s2 + $0x30] sm:$0xf]
  %v514 = vld [vmem:[%s2 + $0x34] sm:$0xf]
  %v515 = vld [vmem:[%s2 + $0x38] sm:$0xf]
  %v516 = vld [vmem:[%s2 + $0x3c] sm:$0xf]
  %v517 = vld [vmem:[%s2 + $0x40] sm:$0xf]
  %v518 = vld [vmem:[%s2 + $0x44] sm:$0xf]
  %v519 = vld [vmem:[%s2 + $0x48] sm:$0xf]
  %v520 = vld [vmem:[%s2 + $0x4c] sm:$0xf]
  %v521 = vld [vmem:[%s3] sm:$0x1]
  %v523 = vlaneseq
  %v524 = vshrl.u32 %v523, 7
  %v525 = vsub.s32 0, %v524
  %v526 = vrot.slane %v521, %v525
  %v548 = vunpack.c.l.b16 %v501
  %v549 = vunpack.c.l.b16 %v502
  %v550 = vunpack.c.l.b16 %v503
  %v551 = vunpack.c.l.b16 %v504
  %v552 = vunpack.c.l.b16 %v505
  %v553 = vunpack.c.l.b16 %v506
  %v554 = vunpack.c.l.b16 %v507
  %v555 = vunpack.c.l.b16 %v508
  %v556 = vunpack.c.l.b16 %v509
  %v557 = vunpack.c.l.b16 %v510
  %v558 = vunpack.c.l.b16 %v511
  %v559 = vunpack.c.l.b16 %v512
  %v560 = vunpack.c.l.b16 %v513
  %v561 = vunpack.c.l.b16 %v514
  %v562 = vunpack.c.l.b16 %v515
  %v563 = vunpack.c.l.b16 %v516
  %v564 = vunpack.c.l.b16 %v517
  %v565 = vunpack.c.l.b16 %v518
  %v566 = vunpack.c.l.b16 %v519
  %v567 = vunpack.c.l.b16 %v520
  %v568 = vpack.c.b16 %v549, %v548
  %v569 = vpack.c.b16 %v551, %v550
  %v570 = vpack.c.b16 %v553, %v552
  %v571 = vpack.c.b16 %v555, %v554
  %v572 = vpack.c.b16 %v557, %v556
  %v573 = vpack.c.b16 %v559, %v558
  %v574 = vpack.c.b16 %v561, %v560
  %v575 = vpack.c.b16 %v563, %v562
  %v576 = vpack.c.b16 %v565, %v564
  %v577 = vpack.c.b16 %v567, %v566
  %v589 = vsel %vm434, %v486, 0
  %v592 = vsel %vm434, %v488, 0
  %v595 = vsel %vm434, %v490, 0
  %v598 = vsel %vm434, %v492, 0
  %v601 = vsel %vm434, %v494, 0
  %v604 = vsel %vm434, %v496, 0
  %v607 = vsel %vm434, %v498, 0
  %v610 = vsel %vm434, %v500, 0
  %612 = vmatprep.subr.bf16.mxu0 0
  %613 = vmatpush1.bf16.msra.mxu0 %v568
  %614 = vmatprep.subr.bf16.mxu0 0
  %615 = vmatpush1.bf16.msra.mxu0 %v569
  %616 = vmatprep.subr.bf16.mxu0 0
  %617 = vmatpush1.bf16.msra.mxu0 %v570
  %618 = vmatprep.subr.bf16.mxu0 0
  %619 = vmatpush1.bf16.msra.mxu0 %v571
  %620 = vmatprep.subr.bf16.mxu0 0
  %621 = vmatpush1.bf16.msra.mxu0 %v572
  %622 = vmatprep.subr.bf16.mxu0 0
  %623 = vmatpush1.bf16.msra.mxu0 %v573
  %624 = vmatprep.subr.bf16.mxu0 0
  %625 = vmatpush1.bf16.msra.mxu0 %v574
  %626 = vmatprep.subr.bf16.mxu0 0
  %627 = vmatpush1.bf16.msra.mxu0 %v575
  %628 = vmatprep.subr.bf16.mxu0 0
  %629 = vmatpush1.bf16.msra.mxu0 %v576
  %630 = vmatprep.subr.bf16.mxu0 0
  %631 = vmatpush1.bf16.msra.mxu0 %v577
  %632 = vmatprep.subr.bf16.mxu0 0
  %633 = vmatpush1.bf16.msra.mxu0 0
  %634 = vmatprep.subr.bf16.mxu0 0
  %635 = vmatpush1.bf16.msra.mxu0 0
  %636 = vmatprep.subr.bf16.mxu0 0
  %637 = vmatpush1.bf16.msra.mxu0 0
  %638 = vmatprep.subr.bf16.mxu0 0
  %639 = vmatpush1.bf16.msra.mxu0 0
  %640 = vmatprep.subr.bf16.mxu0 0
  %641 = vmatpush1.bf16.msra.mxu0 0
  %642 = vmatprep.subr.bf16.mxu0 0
  %643 = vmatpush1.bf16.msra.mxu0 0
  %644 = vmatprep.mubr.bf16.mxu0 %v589
  %645 = vmatmul.mubr.bf16.gmra.mrb[0].mxu0 %v485
  %v646 = vpop.f32.mrb[0].mxu0
  %v647 = vadd.f32 %v526, %v646
  %v648 = vpop.f32.mrb[0].mxu0
  %v649 = vpop.f32.mrb[0].mxu0
  %v650 = vadd.f32 %v526, %v649
  %v651 = vpop.f32.mrb[0].mxu0
  %652 = vmatprep.mubr.bf16.mxu0 %v592
  %653 = vmatmul.mubr.bf16.gmra.mrb[0].mxu0 %v487
  %v654 = vpop.f32.mrb[0].mxu0
  %v655 = vadd.f32 %v526, %v654
  %v656 = vpop.f32.mrb[0].mxu0
  %v657 = vpop.f32.mrb[0].mxu0
  %v658 = vadd.f32 %v526, %v657
  %v659 = vpop.f32.mrb[0].mxu0
  %660 = vmatprep.mubr.bf16.mxu0 %v595
  %661 = vmatmul.mubr.bf16.gmra.mrb[0].mxu0 %v489
  %v662 = vpop.f32.mrb[0].mxu0
  %v663 = vadd.f32 %v526, %v662
  %v664 = vpop.f32.mrb[0].mxu0
  %v665 = vpop.f32.mrb[0].mxu0
  %v666 = vadd.f32 %v526, %v665
  %v667 = vpop.f32.mrb[0].mxu0
  %668 = vmatprep.mubr.bf16.mxu0 %v598
  %669 = vmatmul.mubr.bf16.gmra.mrb[0].mxu0 %v491
  %v670 = vpop.f32.mrb[0].mxu0
  %v671 = vadd.f32 %v526, %v670
  %v672 = vpop.f32.mrb[0].mxu0
  %v673 = vpop.f32.mrb[0].mxu0
  %v674 = vadd.f32 %v526, %v673
  %v675 = vpop.f32.mrb[0].mxu0
  %676 = vmatprep.mubr.bf16.mxu0 %v601
  %677 = vmatmul.mubr.bf16.gmra.mrb[0].mxu0 %v493
  %v678 = vpop.f32.mrb[0].mxu0
  %v679 = vadd.f32 %v526, %v678
  %v680 = vpop.f32.mrb[0].mxu0
  %v681 = vpop.f32.mrb[0].mxu0
  %v682 = vadd.f32 %v526, %v681
  %v683 = vpop.f32.mrb[0].mxu0
  %684 = vmatprep.mubr.bf16.mxu0 %v604
  %685 = vmatmul.mubr.bf16.gmra.mrb[0].mxu0 %v495
  %v686 = vpop.f32.mrb[0].mxu0
  %v687 = vadd.f32 %v526, %v686
  %v688 = vpop.f32.mrb[0].mxu0
  %v689 = vpop.f32.mrb[0].mxu0
  %v690 = vadd.f32 %v526, %v689
  %v691 = vpop.f32.mrb[0].mxu0
  %692 = vmatprep.mubr.bf16.mxu0 %v607
  %693 = vmatmul.mubr.bf16.gmra.mrb[0].mxu0 %v497
  %v694 = vpop.f32.mrb[0].mxu0
  %v695 = vadd.f32 %v526, %v694
  %v696 = vpop.f32.mrb[0].mxu0
  %v697 = vpop.f32.mrb[0].mxu0
  %v698 = vadd.f32 %v526, %v697
  %v699 = vpop.f32.mrb[0].mxu0
  %700 = vmatprep.mubr.bf16.mxu0 %v610
  %701 = vmatmul.mubr.bf16.gmra.mrb[0].mxu0 %v499
  %v702 = vpop.f32.mrb[0].mxu0
  %v703 = vadd.f32 %v526, %v702
  %v704 = vpop.f32.mrb[0].mxu0
  %v705 = vpop.f32.mrb[0].mxu0
  %v706 = vadd.f32 %v526, %v705
  %v707 = vpop.f32.mrb[0].mxu0
  %708 = vdwg.mxu0
  %v709 = vadd.f32 %v647, %v36
  %v710 = vadd.f32 %v650, %v37
  %v711 = vadd.f32 %v655, %v36
  %v712 = vadd.f32 %v658, %v37
  %v713 = vadd.f32 %v663, %v36
  %v714 = vadd.f32 %v666, %v37
  %v715 = vadd.f32 %v671, %v36
  %v716 = vadd.f32 %v674, %v37
  %v717 = vadd.f32 %v679, %v36
  %v718 = vadd.f32 %v682, %v37
  %v719 = vadd.f32 %v687, %v36
  %v720 = vadd.f32 %v690, %v37
  %v721 = vadd.f32 %v695, %v36
  %v722 = vadd.f32 %v698, %v37
  %v723 = vadd.f32 %v703, %v36
  %v724 = vadd.f32 %v706, %v37
  %vm725 = vcmask 392192
  %v726 = vsel %vm725, %v709, -inf
  %v727 = vsel %vm725, %v710, -inf
  %v728 = vmax.f32 %v726, %v727
  %v729 = vrot.slane %v728, 4
  %v730 = vmax.f32 %v728, %v729
  %v731 = vrot.slane %v730, 2
  %v732 = vmax.f32 %v730, %v731
  %v733 = vrot.slane %v732, 1
  %v734 = vmax.f32 %v732, %v733
  %v735 = vsel %vm725, %v711, -inf
  %v736 = vsel %vm725, %v712, -inf
  %v737 = vmax.f32 %v735, %v736
  %v738 = vrot.slane %v737, 4
  %v739 = vmax.f32 %v737, %v738
  %v740 = vrot.slane %v739, 2
  %v741 = vmax.f32 %v739, %v740
  %v742 = vrot.slane %v741, 1
  %v743 = vmax.f32 %v741, %v742
  %v744 = vsel %vm725, %v713, -inf
  %v745 = vsel %vm725, %v714, -inf
  %v746 = vmax.f32 %v744, %v745
  %v747 = vrot.slane %v746, 4
  %v748 = vmax.f32 %v746, %v747
  %v749 = vrot.slane %v748, 2
  %v750 = vmax.f32 %v748, %v749
  %v751 = vrot.slane %v750, 1
  %v752 = vmax.f32 %v750, %v751
  %v753 = vsel %vm725, %v715, -inf
  %v754 = vsel %vm725, %v716, -inf
  %v755 = vmax.f32 %v753, %v754
  %v756 = vrot.slane %v755, 4
  %v757 = vmax.f32 %v755, %v756
  %v758 = vrot.slane %v757, 2
  %v759 = vmax.f32 %v757, %v758
  %v760 = vrot.slane %v759, 1
  %v761 = vmax.f32 %v759, %v760
  %v762 = vsel %vm725, %v717, -inf
  %v763 = vsel %vm725, %v718, -inf
  %v764 = vmax.f32 %v762, %v763
  %v765 = vrot.slane %v764, 4
  %v766 = vmax.f32 %v764, %v765
  %v767 = vrot.slane %v766, 2
  %v768 = vmax.f32 %v766, %v767
  %v769 = vrot.slane %v768, 1
  %v770 = vmax.f32 %v768, %v769
  %v771 = vsel %vm725, %v719, -inf
  %v772 = vsel %vm725, %v720, -inf
  %v773 = vmax.f32 %v771, %v772
  %v774 = vrot.slane %v773, 4
  %v775 = vmax.f32 %v773, %v774
  %v776 = vrot.slane %v775, 2
  %v777 = vmax.f32 %v775, %v776
  %v778 = vrot.slane %v777, 1
  %v779 = vmax.f32 %v777, %v778
  %v780 = vsel %vm725, %v721, -inf
  %v781 = vsel %vm725, %v722, -inf
  %v782 = vmax.f32 %v780, %v781
  %v783 = vrot.slane %v782, 4
  %v784 = vmax.f32 %v782, %v783
  %v785 = vrot.slane %v784, 2
  %v786 = vmax.f32 %v784, %v785
  %v787 = vrot.slane %v786, 1
  %v788 = vmax.f32 %v786, %v787
  %v789 = vsel %vm725, %v723, -inf
  %v790 = vsel %vm725, %v724, -inf
  %v791 = vmax.f32 %v789, %v790
  %v792 = vrot.slane %v791, 4
  %v793 = vmax.f32 %v791, %v792
  %v794 = vrot.slane %v793, 2
  %v795 = vmax.f32 %v793, %v794
  %v796 = vrot.slane %v795, 1
  %v797 = vmax.f32 %v795, %v796
  %v798 = vmax.f32 %v734, 0.0
  %v799 = vmax.f32 %v743, 0.0
  %v800 = vmax.f32 %v752, 0.0
  %v801 = vmax.f32 %v761, 0.0
  %v802 = vmax.f32 %v770, 0.0
  %v803 = vmax.f32 %v779, 0.0
  %v804 = vmax.f32 %v788, 0.0
  %v805 = vmax.f32 %v797, 0.0
  %v806 = vld [vmem:[%s1] sm:$0xf]
  %v807 = vld [vmem:[%s1 + $0x4] sm:$0xf]
  %v808 = vld [vmem:[%s1 + $0x8] sm:$0xf]
  %v809 = vld [vmem:[%s1 + $0xc] sm:$0xf]
  %v810 = vld [vmem:[%s1 + $0x10] sm:$0xf]
  %v811 = vld [vmem:[%s1 + $0x14] sm:$0xf]
  %v812 = vld [vmem:[%s1 + $0x18] sm:$0xf]
  %v813 = vld [vmem:[%s1 + $0x1c] sm:$0xf]
  %v814 = vld [vmem:[%s1 + $0x20] sm:$0xf]
  %v815 = vld [vmem:[%s1 + $0x24] sm:$0xf]
  %v816 = vld [vmem:[%s1 + $0x28] sm:$0xf]
  %v817 = vld [vmem:[%s1 + $0x2c] sm:$0xf]
  %v818 = vld [vmem:[%s1 + $0x30] sm:$0xf]
  %v819 = vld [vmem:[%s1 + $0x34] sm:$0xf]
  %v820 = vld [vmem:[%s1 + $0x38] sm:$0xf]
  %v821 = vld [vmem:[%s1 + $0x3c] sm:$0xf]
  %v822 = vld [vmem:[%s1 + $0x40] sm:$0xf]
  %v823 = vld [vmem:[%s1 + $0x44] sm:$0xf]
  %v824 = vld [vmem:[%s1 + $0x48] sm:$0xf]
  %v825 = vld [vmem:[%s1 + $0x4c] sm:$0xf]
  %v826 = vld [vmem:[%s1 + $0x50] sm:$0xf]
  %v827 = vld [vmem:[%s1 + $0x54] sm:$0xf]
  %v828 = vld [vmem:[%s1 + $0x58] sm:$0xf]
  %v829 = vld [vmem:[%s1 + $0x5c] sm:$0xf]
  %v830 = vunpack.c.l.bf16 %v806
  %v831 = vunpack.c.l.bf16 %v807
  %v832 = vunpack.c.l.bf16 %v808
  %v833 = vunpack.c.l.bf16 %v809
  %v834 = vunpack.c.l.bf16 %v810
  %v835 = vunpack.c.l.bf16 %v811
  %v836 = vunpack.c.l.bf16 %v812
  %v837 = vunpack.c.l.bf16 %v813
  %v838 = vunpack.c.l.bf16 %v814
  %v839 = vunpack.c.l.bf16 %v815
  %v840 = vunpack.c.l.bf16 %v816
  %v841 = vunpack.c.l.bf16 %v817
  %v842 = vunpack.c.l.bf16 %v818
  %v843 = vunpack.c.l.bf16 %v819
  %v844 = vunpack.c.l.bf16 %v820
  %v845 = vunpack.c.l.bf16 %v821
  %v846 = vunpack.c.l.bf16 %v822
  %v847 = vunpack.c.l.bf16 %v823
  %v848 = vunpack.c.l.bf16 %v824
  %v849 = vunpack.c.l.bf16 %v825
  %v850 = vunpack.c.l.bf16 %v826
  %v851 = vunpack.c.l.bf16 %v827
  %v852 = vunpack.c.l.bf16 %v828
  %v853 = vunpack.c.l.bf16 %v829
  %v878 = vrot.slane %v830, 1
  %v879 = vrot.slane %v831, 1
  %v880 = vsel %vm110, %v878, %v879
  %v881 = vrot.slane %v832, 1
  %v882 = vsel %vm110, %v879, %v881
  %v883 = vrot.slane %v833, 1
  %v884 = vrot.slane %v834, 1
  %v885 = vsel %vm110, %v883, %v884
  %v886 = vrot.slane %v835, 1
  %v887 = vsel %vm110, %v884, %v886
  %v888 = vrot.slane %v836, 1
  %v889 = vrot.slane %v837, 1
  %v890 = vsel %vm110, %v888, %v889
  %v891 = vrot.slane %v838, 1
  %v892 = vsel %vm110, %v889, %v891
  %v893 = vrot.slane %v839, 1
  %v894 = vrot.slane %v840, 1
  %v895 = vsel %vm110, %v893, %v894
  %v896 = vrot.slane %v841, 1
  %v897 = vsel %vm110, %v894, %v896
  %v898 = vrot.slane %v842, 1
  %v899 = vrot.slane %v843, 1
  %v900 = vsel %vm110, %v898, %v899
  %v901 = vrot.slane %v844, 1
  %v902 = vsel %vm110, %v899, %v901
  %v903 = vrot.slane %v845, 1
  %v904 = vrot.slane %v846, 1
  %v905 = vsel %vm110, %v903, %v904
  %v906 = vrot.slane %v847, 1
  %v907 = vsel %vm110, %v904, %v906
  %v908 = vrot.slane %v848, 1
  %v909 = vrot.slane %v849, 1
  %v910 = vsel %vm110, %v908, %v909
  %v911 = vrot.slane %v850, 1
  %v912 = vsel %vm110, %v909, %v911
  %v913 = vrot.slane %v851, 1
  %v914 = vrot.slane %v852, 1
  %v915 = vsel %vm110, %v913, %v914
  %v916 = vrot.slane %v853, 1
  %v917 = vsel %vm110, %v914, %v916
  %918 = vrot.lane.b32.xlu0 %v880, 32
  %v919 = vpop.permute.xlu0 %918
  %920 = vrot.lane.b32.xlu0 %v882, 32
  %v921 = vpop.permute.xlu0 %920
  %922 = vrot.lane.b32.xlu0 %v885, 32
  %v923 = vpop.permute.xlu0 %922
  %924 = vrot.lane.b32.xlu0 %v887, 32
  %v925 = vpop.permute.xlu0 %924
  %926 = vrot.lane.b32.xlu0 %v890, 32
  %v927 = vpop.permute.xlu0 %926
  %928 = vrot.lane.b32.xlu0 %v892, 32
  %v929 = vpop.permute.xlu0 %928
  %930 = vrot.lane.b32.xlu0 %v895, 32
  %v931 = vpop.permute.xlu0 %930
  %932 = vrot.lane.b32.xlu0 %v897, 32
  %v933 = vpop.permute.xlu0 %932
  %934 = vrot.lane.b32.xlu0 %v900, 32
  %v935 = vpop.permute.xlu0 %934
  %936 = vrot.lane.b32.xlu0 %v902, 32
  %v937 = vpop.permute.xlu0 %936
  %938 = vrot.lane.b32.xlu0 %v905, 32
  %v939 = vpop.permute.xlu0 %938
  %940 = vrot.lane.b32.xlu0 %v907, 32
  %v941 = vpop.permute.xlu0 %940
  %942 = vrot.lane.b32.xlu0 %v910, 32
  %v943 = vpop.permute.xlu0 %942
  %944 = vrot.lane.b32.xlu0 %v912, 32
  %v945 = vpop.permute.xlu0 %944
  %946 = vrot.lane.b32.xlu0 %v915, 32
  %v947 = vpop.permute.xlu0 %946
  %948 = vrot.lane.b32.xlu0 %v917, 32
  %v949 = vpop.permute.xlu0 %948
  %v966 = vrot.slane %v830, 2
  %v967 = vrot.slane %v831, 2
  %v968 = vsel %vm199, %v966, %v967
  %v969 = vrot.slane %v832, 2
  %v970 = vsel %vm199, %v967, %v969
  %v971 = vrot.slane %v833, 2
  %v972 = vrot.slane %v834, 2
  %v973 = vsel %vm199, %v971, %v972
  %v974 = vrot.slane %v835, 2
  %v975 = vsel %vm199, %v972, %v974
  %v976 = vrot.slane %v836, 2
  %v977 = vrot.slane %v837, 2
  %v978 = vsel %vm199, %v976, %v977
  %v979 = vrot.slane %v838, 2
  %v980 = vsel %vm199, %v977, %v979
  %v981 = vrot.slane %v839, 2
  %v982 = vrot.slane %v840, 2
  %v983 = vsel %vm199, %v981, %v982
  %v984 = vrot.slane %v841, 2
  %v985 = vsel %vm199, %v982, %v984
  %v986 = vrot.slane %v842, 2
  %v987 = vrot.slane %v843, 2
  %v988 = vsel %vm199, %v986, %v987
  %v989 = vrot.slane %v844, 2
  %v990 = vsel %vm199, %v987, %v989
  %v991 = vrot.slane %v845, 2
  %v992 = vrot.slane %v846, 2
  %v993 = vsel %vm199, %v991, %v992
  %v994 = vrot.slane %v847, 2
  %v995 = vsel %vm199, %v992, %v994
  %v996 = vrot.slane %v848, 2
  %v997 = vrot.slane %v849, 2
  %v998 = vsel %vm199, %v996, %v997
  %v999 = vrot.slane %v850, 2
  %v1000 = vsel %vm199, %v997, %v999
  %v1001 = vrot.slane %v851, 2
  %v1002 = vrot.slane %v852, 2
  %v1003 = vsel %vm199, %v1001, %v1002
  %v1004 = vrot.slane %v853, 2
  %v1005 = vsel %vm199, %v1002, %v1004
  %1006 = vrot.lane.b32.xlu0 %v968, 64
  %v1007 = vpop.permute.xlu0 %1006
  %1008 = vrot.lane.b32.xlu0 %v970, 64
  %v1009 = vpop.permute.xlu0 %1008
  %1010 = vrot.lane.b32.xlu0 %v973, 64
  %v1011 = vpop.permute.xlu0 %1010
  %1012 = vrot.lane.b32.xlu0 %v975, 64
  %v1013 = vpop.permute.xlu0 %1012
  %1014 = vrot.lane.b32.xlu0 %v978, 64
  %v1015 = vpop.permute.xlu0 %1014
  %1016 = vrot.lane.b32.xlu0 %v980, 64
  %v1017 = vpop.permute.xlu0 %1016
  %1018 = vrot.lane.b32.xlu0 %v983, 64
  %v1019 = vpop.permute.xlu0 %1018
  %1020 = vrot.lane.b32.xlu0 %v985, 64
  %v1021 = vpop.permute.xlu0 %1020
  %1022 = vrot.lane.b32.xlu0 %v988, 64
  %v1023 = vpop.permute.xlu0 %1022
  %1024 = vrot.lane.b32.xlu0 %v990, 64
  %v1025 = vpop.permute.xlu0 %1024
  %1026 = vrot.lane.b32.xlu0 %v993, 64
  %v1027 = vpop.permute.xlu0 %1026
  %1028 = vrot.lane.b32.xlu0 %v995, 64
  %v1029 = vpop.permute.xlu0 %1028
  %1030 = vrot.lane.b32.xlu0 %v998, 64
  %v1031 = vpop.permute.xlu0 %1030
  %1032 = vrot.lane.b32.xlu0 %v1000, 64
  %v1033 = vpop.permute.xlu0 %1032
  %1034 = vrot.lane.b32.xlu0 %v1003, 64
  %v1035 = vpop.permute.xlu0 %1034
  %1036 = vrot.lane.b32.xlu0 %v1005, 64
  %v1037 = vpop.permute.xlu0 %1036
  %v1054 = vrot.slane %v830, 3
  %v1055 = vrot.slane %v831, 3
  %v1056 = vsel %vm288, %v1054, %v1055
  %v1057 = vrot.slane %v832, 3
  %v1058 = vsel %vm288, %v1055, %v1057
  %v1059 = vrot.slane %v833, 3
  %v1060 = vrot.slane %v834, 3
  %v1061 = vsel %vm288, %v1059, %v1060
  %v1062 = vrot.slane %v835, 3
  %v1063 = vsel %vm288, %v1060, %v1062
  %v1064 = vrot.slane %v836, 3
  %v1065 = vrot.slane %v837, 3
  %v1066 = vsel %vm288, %v1064, %v1065
  %v1067 = vrot.slane %v838, 3
  %v1068 = vsel %vm288, %v1065, %v1067
  %v1069 = vrot.slane %v839, 3
  %v1070 = vrot.slane %v840, 3
  %v1071 = vsel %vm288, %v1069, %v1070
  %v1072 = vrot.slane %v841, 3
  %v1073 = vsel %vm288, %v1070, %v1072
  %v1074 = vrot.slane %v842, 3
  %v1075 = vrot.slane %v843, 3
  %v1076 = vsel %vm288, %v1074, %v1075
  %v1077 = vrot.slane %v844, 3
  %v1078 = vsel %vm288, %v1075, %v1077
  %v1079 = vrot.slane %v845, 3
  %v1080 = vrot.slane %v846, 3
  %v1081 = vsel %vm288, %v1079, %v1080
  %v1082 = vrot.slane %v847, 3
  %v1083 = vsel %vm288, %v1080, %v1082
  %v1084 = vrot.slane %v848, 3
  %v1085 = vrot.slane %v849, 3
  %v1086 = vsel %vm288, %v1084, %v1085
  %v1087 = vrot.slane %v850, 3
  %v1088 = vsel %vm288, %v1085, %v1087
  %v1089 = vrot.slane %v851, 3
  %v1090 = vrot.slane %v852, 3
  %v1091 = vsel %vm288, %v1089, %v1090
  %v1092 = vrot.slane %v853, 3
  %v1093 = vsel %vm288, %v1090, %v1092
  %1094 = vrot.lane.b32.xlu0 %v1056, 96
  %v1095 = vpop.permute.xlu0 %1094
  %1096 = vrot.lane.b32.xlu0 %v1058, 96
  %v1097 = vpop.permute.xlu0 %1096
  %1098 = vrot.lane.b32.xlu0 %v1061, 96
  %v1099 = vpop.permute.xlu0 %1098
  %1100 = vrot.lane.b32.xlu0 %v1063, 96
  %v1101 = vpop.permute.xlu0 %1100
  %1102 = vrot.lane.b32.xlu0 %v1066, 96
  %v1103 = vpop.permute.xlu0 %1102
  %1104 = vrot.lane.b32.xlu0 %v1068, 96
  %v1105 = vpop.permute.xlu0 %1104
  %1106 = vrot.lane.b32.xlu0 %v1071, 96
  %v1107 = vpop.permute.xlu0 %1106
  %1108 = vrot.lane.b32.xlu0 %v1073, 96
  %v1109 = vpop.permute.xlu0 %1108
  %1110 = vrot.lane.b32.xlu0 %v1076, 96
  %v1111 = vpop.permute.xlu0 %1110
  %1112 = vrot.lane.b32.xlu0 %v1078, 96
  %v1113 = vpop.permute.xlu0 %1112
  %1114 = vrot.lane.b32.xlu0 %v1081, 96
  %v1115 = vpop.permute.xlu0 %1114
  %1116 = vrot.lane.b32.xlu0 %v1083, 96
  %v1117 = vpop.permute.xlu0 %1116
  %1118 = vrot.lane.b32.xlu0 %v1086, 96
  %v1119 = vpop.permute.xlu0 %1118
  %1120 = vrot.lane.b32.xlu0 %v1088, 96
  %v1121 = vpop.permute.xlu0 %1120
  %1122 = vrot.lane.b32.xlu0 %v1091, 96
  %v1123 = vpop.permute.xlu0 %1122
  %1124 = vrot.lane.b32.xlu0 %v1093, 96
  %v1125 = vpop.permute.xlu0 %1124
  %v1142 = vrot.slane %v830, 4
  %v1143 = vrot.slane %v831, 4
  %v1144 = vsel %vm377, %v1142, %v1143
  %v1145 = vrot.slane %v832, 4
  %v1146 = vsel %vm377, %v1143, %v1145
  %v1147 = vrot.slane %v833, 4
  %v1148 = vrot.slane %v834, 4
  %v1149 = vsel %vm377, %v1147, %v1148
  %v1150 = vrot.slane %v835, 4
  %v1151 = vsel %vm377, %v1148, %v1150
  %v1152 = vrot.slane %v836, 4
  %v1153 = vrot.slane %v837, 4
  %v1154 = vsel %vm377, %v1152, %v1153
  %v1155 = vrot.slane %v838, 4
  %v1156 = vsel %vm377, %v1153, %v1155
  %v1157 = vrot.slane %v839, 4
  %v1158 = vrot.slane %v840, 4
  %v1159 = vsel %vm377, %v1157, %v1158
  %v1160 = vrot.slane %v841, 4
  %v1161 = vsel %vm377, %v1158, %v1160
  %v1162 = vrot.slane %v842, 4
  %v1163 = vrot.slane %v843, 4
  %v1164 = vsel %vm377, %v1162, %v1163
  %v1165 = vrot.slane %v844, 4
  %v1166 = vsel %vm377, %v1163, %v1165
  %v1167 = vrot.slane %v845, 4
  %v1168 = vrot.slane %v846, 4
  %v1169 = vsel %vm377, %v1167, %v1168
  %v1170 = vrot.slane %v847, 4
  %v1171 = vsel %vm377, %v1168, %v1170
  %v1172 = vrot.slane %v848, 4
  %v1173 = vrot.slane %v849, 4
  %v1174 = vsel %vm377, %v1172, %v1173
  %v1175 = vrot.slane %v850, 4
  %v1176 = vsel %vm377, %v1173, %v1175
  %v1177 = vrot.slane %v851, 4
  %v1178 = vrot.slane %v852, 4
  %v1179 = vsel %vm377, %v1177, %v1178
  %v1180 = vrot.slane %v853, 4
  %v1181 = vsel %vm377, %v1178, %v1180
  %v1198 = vsel %vm434, %v830, %v919
  %v1199 = vsel %vm434, %v831, %v921
  %v1200 = vsel %vm434, %v833, %v923
  %v1201 = vsel %vm434, %v834, %v925
  %v1202 = vsel %vm434, %v836, %v927
  %v1203 = vsel %vm434, %v837, %v929
  %v1204 = vsel %vm434, %v839, %v931
  %v1205 = vsel %vm434, %v840, %v933
  %v1206 = vsel %vm434, %v842, %v935
  %v1207 = vsel %vm434, %v843, %v937
  %v1208 = vsel %vm434, %v845, %v939
  %v1209 = vsel %vm434, %v846, %v941
  %v1210 = vsel %vm434, %v848, %v943
  %v1211 = vsel %vm434, %v849, %v945
  %v1212 = vsel %vm434, %v851, %v947
  %v1213 = vsel %vm434, %v852, %v949
  %v1214 = vsel %vm451, %v1198, %v1007
  %v1215 = vsel %vm451, %v1199, %v1009
  %v1216 = vsel %vm451, %v1200, %v1011
  %v1217 = vsel %vm451, %v1201, %v1013
  %v1218 = vsel %vm451, %v1202, %v1015
  %v1219 = vsel %vm451, %v1203, %v1017
  %v1220 = vsel %vm451, %v1204, %v1019
  %v1221 = vsel %vm451, %v1205, %v1021
  %v1222 = vsel %vm451, %v1206, %v1023
  %v1223 = vsel %vm451, %v1207, %v1025
  %v1224 = vsel %vm451, %v1208, %v1027
  %v1225 = vsel %vm451, %v1209, %v1029
  %v1226 = vsel %vm451, %v1210, %v1031
  %v1227 = vsel %vm451, %v1211, %v1033
  %v1228 = vsel %vm451, %v1212, %v1035
  %v1229 = vsel %vm451, %v1213, %v1037
  %v1230 = vsel %vm468, %v1214, %v1095
  %v1231 = vsel %vm468, %v1215, %v1097
  %v1232 = vsel %vm468, %v1216, %v1099
  %v1233 = vsel %vm468, %v1217, %v1101
  %v1234 = vsel %vm468, %v1218, %v1103
  %v1235 = vsel %vm468, %v1219, %v1105
  %v1236 = vsel %vm468, %v1220, %v1107
  %v1237 = vsel %vm468, %v1221, %v1109
  %v1238 = vsel %vm468, %v1222, %v1111
  %v1239 = vsel %vm468, %v1223, %v1113
  %v1240 = vsel %vm468, %v1224, %v1115
  %v1241 = vsel %vm468, %v1225, %v1117
  %v1242 = vsel %vm468, %v1226, %v1119
  %v1243 = vsel %vm468, %v1227, %v1121
  %v1244 = vsel %vm468, %v1228, %v1123
  %v1245 = vsel %vm468, %v1229, %v1125
  %v1246 = vpack.c.bf16 %v1231, %v1230
  %v1247 = vpack.c.bf16 %v1146, %v1144
  %v1248 = vpack.c.bf16 %v1233, %v1232
  %v1249 = vpack.c.bf16 %v1151, %v1149
  %v1250 = vpack.c.bf16 %v1235, %v1234
  %v1251 = vpack.c.bf16 %v1156, %v1154
  %v1252 = vpack.c.bf16 %v1237, %v1236
  %v1253 = vpack.c.bf16 %v1161, %v1159
  %v1254 = vpack.c.bf16 %v1239, %v1238
  %v1255 = vpack.c.bf16 %v1166, %v1164
  %v1256 = vpack.c.bf16 %v1241, %v1240
  %v1257 = vpack.c.bf16 %v1171, %v1169
  %v1258 = vpack.c.bf16 %v1243, %v1242
  %v1259 = vpack.c.bf16 %v1176, %v1174
  %v1260 = vpack.c.bf16 %v1245, %v1244
  %v1261 = vpack.c.bf16 %v1181, %v1179
  %v1262 = vld [vmem:[%s4] sm:$0xf]
  %v1263 = vld [vmem:[%s4 + $0x4] sm:$0xf]
  %v1264 = vld [vmem:[%s4 + $0x8] sm:$0xf]
  %v1265 = vld [vmem:[%s4 + $0xc] sm:$0xf]
  %v1266 = vld [vmem:[%s4 + $0x10] sm:$0xf]
  %v1267 = vld [vmem:[%s4 + $0x14] sm:$0xf]
  %v1268 = vld [vmem:[%s4 + $0x18] sm:$0xf]
  %v1269 = vld [vmem:[%s4 + $0x1c] sm:$0xf]
  %v1270 = vld [vmem:[%s4 + $0x20] sm:$0xf]
  %v1271 = vld [vmem:[%s4 + $0x24] sm:$0xf]
  %v1272 = vld [vmem:[%s4 + $0x28] sm:$0xf]
  %v1273 = vld [vmem:[%s4 + $0x2c] sm:$0xf]
  %v1274 = vld [vmem:[%s4 + $0x30] sm:$0xf]
  %v1275 = vld [vmem:[%s4 + $0x34] sm:$0xf]
  %v1276 = vld [vmem:[%s4 + $0x38] sm:$0xf]
  %v1277 = vld [vmem:[%s4 + $0x3c] sm:$0xf]
  %v1278 = vld [vmem:[%s4 + $0x40] sm:$0xf]
  %v1279 = vld [vmem:[%s4 + $0x44] sm:$0xf]
  %v1280 = vld [vmem:[%s4 + $0x48] sm:$0xf]
  %v1281 = vld [vmem:[%s4 + $0x4c] sm:$0xf]
  %v1282 = vld [vmem:[%s5] sm:$0x1]
  %v1284 = vlaneseq
  %v1285 = vshrl.u32 %v1284, 7
  %v1286 = vsub.s32 0, %v1285
  %v1287 = vrot.slane %v1282, %v1286
  %v1309 = vunpack.c.l.b16 %v1262
  %v1310 = vunpack.c.l.b16 %v1263
  %v1311 = vunpack.c.l.b16 %v1264
  %v1312 = vunpack.c.l.b16 %v1265
  %v1313 = vunpack.c.l.b16 %v1266
  %v1314 = vunpack.c.l.b16 %v1267
  %v1315 = vunpack.c.l.b16 %v1268
  %v1316 = vunpack.c.l.b16 %v1269
  %v1317 = vunpack.c.l.b16 %v1270
  %v1318 = vunpack.c.l.b16 %v1271
  %v1319 = vunpack.c.l.b16 %v1272
  %v1320 = vunpack.c.l.b16 %v1273
  %v1321 = vunpack.c.l.b16 %v1274
  %v1322 = vunpack.c.l.b16 %v1275
  %v1323 = vunpack.c.l.b16 %v1276
  %v1324 = vunpack.c.l.b16 %v1277
  %v1325 = vunpack.c.l.b16 %v1278
  %v1326 = vunpack.c.l.b16 %v1279
  %v1327 = vunpack.c.l.b16 %v1280
  %v1328 = vunpack.c.l.b16 %v1281
  %v1329 = vpack.c.b16 %v1310, %v1309
  %v1330 = vpack.c.b16 %v1312, %v1311
  %v1331 = vpack.c.b16 %v1314, %v1313
  %v1332 = vpack.c.b16 %v1316, %v1315
  %v1333 = vpack.c.b16 %v1318, %v1317
  %v1334 = vpack.c.b16 %v1320, %v1319
  %v1335 = vpack.c.b16 %v1322, %v1321
  %v1336 = vpack.c.b16 %v1324, %v1323
  %v1337 = vpack.c.b16 %v1326, %v1325
  %v1338 = vpack.c.b16 %v1328, %v1327
  %v1350 = vsel %vm434, %v1247, 0
  %v1353 = vsel %vm434, %v1249, 0
  %v1356 = vsel %vm434, %v1251, 0
  %v1359 = vsel %vm434, %v1253, 0
  %v1362 = vsel %vm434, %v1255, 0
  %v1365 = vsel %vm434, %v1257, 0
  %v1368 = vsel %vm434, %v1259, 0
  %v1371 = vsel %vm434, %v1261, 0
  %1373 = vmatprep.subr.bf16.mxu0 0
  %1374 = vmatpush1.bf16.msra.mxu0 %v1329
  %1375 = vmatprep.subr.bf16.mxu0 0
  %1376 = vmatpush1.bf16.msra.mxu0 %v1330
  %1377 = vmatprep.subr.bf16.mxu0 0
  %1378 = vmatpush1.bf16.msra.mxu0 %v1331
  %1379 = vmatprep.subr.bf16.mxu0 0
  %1380 = vmatpush1.bf16.msra.mxu0 %v1332
  %1381 = vmatprep.subr.bf16.mxu0 0
  %1382 = vmatpush1.bf16.msra.mxu0 %v1333
  %1383 = vmatprep.subr.bf16.mxu0 0
  %1384 = vmatpush1.bf16.msra.mxu0 %v1334
  %1385 = vmatprep.subr.bf16.mxu0 0
  %1386 = vmatpush1.bf16.msra.mxu0 %v1335
  %1387 = vmatprep.subr.bf16.mxu0 0
  %1388 = vmatpush1.bf16.msra.mxu0 %v1336
  %1389 = vmatprep.subr.bf16.mxu0 0
  %1390 = vmatpush1.bf16.msra.mxu0 %v1337
  %1391 = vmatprep.subr.bf16.mxu0 0
  %1392 = vmatpush1.bf16.msra.mxu0 %v1338
  %1393 = vmatprep.subr.bf16.mxu0 0
  %1394 = vmatpush1.bf16.msra.mxu0 0
  %1395 = vmatprep.subr.bf16.mxu0 0
  %1396 = vmatpush1.bf16.msra.mxu0 0
  %1397 = vmatprep.subr.bf16.mxu0 0
  %1398 = vmatpush1.bf16.msra.mxu0 0
  %1399 = vmatprep.subr.bf16.mxu0 0
  %1400 = vmatpush1.bf16.msra.mxu0 0
  %1401 = vmatprep.subr.bf16.mxu0 0
  %1402 = vmatpush1.bf16.msra.mxu0 0
  %1403 = vmatprep.subr.bf16.mxu0 0
  %1404 = vmatpush1.bf16.msra.mxu0 0
  %1405 = vmatprep.mubr.bf16.mxu0 %v1350
  %1406 = vmatmul.mubr.bf16.gmra.mrb[0].mxu0 %v1246
  %v1407 = vpop.f32.mrb[0].mxu0
  %v1408 = vadd.f32 %v1287, %v1407
  %v1409 = vpop.f32.mrb[0].mxu0
  %v1410 = vpop.f32.mrb[0].mxu0
  %v1411 = vadd.f32 %v1287, %v1410
  %v1412 = vpop.f32.mrb[0].mxu0
  %1413 = vmatprep.mubr.bf16.mxu0 %v1353
  %1414 = vmatmul.mubr.bf16.gmra.mrb[0].mxu0 %v1248
  %v1415 = vpop.f32.mrb[0].mxu0
  %v1416 = vadd.f32 %v1287, %v1415
  %v1417 = vpop.f32.mrb[0].mxu0
  %v1418 = vpop.f32.mrb[0].mxu0
  %v1419 = vadd.f32 %v1287, %v1418
  %v1420 = vpop.f32.mrb[0].mxu0
  %1421 = vmatprep.mubr.bf16.mxu0 %v1356
  %1422 = vmatmul.mubr.bf16.gmra.mrb[0].mxu0 %v1250
  %v1423 = vpop.f32.mrb[0].mxu0
  %v1424 = vadd.f32 %v1287, %v1423
  %v1425 = vpop.f32.mrb[0].mxu0
  %v1426 = vpop.f32.mrb[0].mxu0
  %v1427 = vadd.f32 %v1287, %v1426
  %v1428 = vpop.f32.mrb[0].mxu0
  %1429 = vmatprep.mubr.bf16.mxu0 %v1359
  %1430 = vmatmul.mubr.bf16.gmra.mrb[0].mxu0 %v1252
  %v1431 = vpop.f32.mrb[0].mxu0
  %v1432 = vadd.f32 %v1287, %v1431
  %v1433 = vpop.f32.mrb[0].mxu0
  %v1434 = vpop.f32.mrb[0].mxu0
  %v1435 = vadd.f32 %v1287, %v1434
  %v1436 = vpop.f32.mrb[0].mxu0
  %1437 = vmatprep.mubr.bf16.mxu0 %v1362
  %1438 = vmatmul.mubr.bf16.gmra.mrb[0].mxu0 %v1254
  %v1439 = vpop.f32.mrb[0].mxu0
  %v1440 = vadd.f32 %v1287, %v1439
  %v1441 = vpop.f32.mrb[0].mxu0
  %v1442 = vpop.f32.mrb[0].mxu0
  %v1443 = vadd.f32 %v1287, %v1442
  %v1444 = vpop.f32.mrb[0].mxu0
  %1445 = vmatprep.mubr.bf16.mxu0 %v1365
  %1446 = vmatmul.mubr.bf16.gmra.mrb[0].mxu0 %v1256
  %v1447 = vpop.f32.mrb[0].mxu0
  %v1448 = vadd.f32 %v1287, %v1447
  %v1449 = vpop.f32.mrb[0].mxu0
  %v1450 = vpop.f32.mrb[0].mxu0
  %v1451 = vadd.f32 %v1287, %v1450
  %v1452 = vpop.f32.mrb[0].mxu0
  %1453 = vmatprep.mubr.bf16.mxu0 %v1368
  %1454 = vmatmul.mubr.bf16.gmra.mrb[0].mxu0 %v1258
  %v1455 = vpop.f32.mrb[0].mxu0
  %v1456 = vadd.f32 %v1287, %v1455
  %v1457 = vpop.f32.mrb[0].mxu0
  %v1458 = vpop.f32.mrb[0].mxu0
  %v1459 = vadd.f32 %v1287, %v1458
  %v1460 = vpop.f32.mrb[0].mxu0
  %1461 = vmatprep.mubr.bf16.mxu0 %v1371
  %1462 = vmatmul.mubr.bf16.gmra.mrb[0].mxu0 %v1260
  %v1463 = vpop.f32.mrb[0].mxu0
  %v1464 = vadd.f32 %v1287, %v1463
  %v1465 = vpop.f32.mrb[0].mxu0
  %v1466 = vpop.f32.mrb[0].mxu0
  %v1467 = vadd.f32 %v1287, %v1466
  %v1468 = vpop.f32.mrb[0].mxu0
  %1469 = vdwg.mxu0
  %v1470 = vadd.f32 %v1408, %v36
  %v1471 = vadd.f32 %v1411, %v37
  %v1472 = vadd.f32 %v1416, %v36
  %v1473 = vadd.f32 %v1419, %v37
  %v1474 = vadd.f32 %v1424, %v36
  %v1475 = vadd.f32 %v1427, %v37
  %v1476 = vadd.f32 %v1432, %v36
  %v1477 = vadd.f32 %v1435, %v37
  %v1478 = vadd.f32 %v1440, %v36
  %v1479 = vadd.f32 %v1443, %v37
  %v1480 = vadd.f32 %v1448, %v36
  %v1481 = vadd.f32 %v1451, %v37
  %v1482 = vadd.f32 %v1456, %v36
  %v1483 = vadd.f32 %v1459, %v37
  %v1484 = vadd.f32 %v1464, %v36
  %v1485 = vadd.f32 %v1467, %v37
  %v1486 = vsel %vm725, %v1470, -inf
  %v1487 = vsel %vm725, %v1471, -inf
  %v1488 = vmax.f32 %v1486, %v1487
  %v1489 = vrot.slane %v1488, 4
  %v1490 = vmax.f32 %v1488, %v1489
  %v1491 = vrot.slane %v1490, 2
  %v1492 = vmax.f32 %v1490, %v1491
  %v1493 = vrot.slane %v1492, 1
  %v1494 = vmax.f32 %v1492, %v1493
  %v1495 = vsel %vm725, %v1472, -inf
  %v1496 = vsel %vm725, %v1473, -inf
  %v1497 = vmax.f32 %v1495, %v1496
  %v1498 = vrot.slane %v1497, 4
  %v1499 = vmax.f32 %v1497, %v1498
  %v1500 = vrot.slane %v1499, 2
  %v1501 = vmax.f32 %v1499, %v1500
  %v1502 = vrot.slane %v1501, 1
  %v1503 = vmax.f32 %v1501, %v1502
  %v1504 = vsel %vm725, %v1474, -inf
  %v1505 = vsel %vm725, %v1475, -inf
  %v1506 = vmax.f32 %v1504, %v1505
  %v1507 = vrot.slane %v1506, 4
  %v1508 = vmax.f32 %v1506, %v1507
  %v1509 = vrot.slane %v1508, 2
  %v1510 = vmax.f32 %v1508, %v1509
  %v1511 = vrot.slane %v1510, 1
  %v1512 = vmax.f32 %v1510, %v1511
  %v1513 = vsel %vm725, %v1476, -inf
  %v1514 = vsel %vm725, %v1477, -inf
  %v1515 = vmax.f32 %v1513, %v1514
  %v1516 = vrot.slane %v1515, 4
  %v1517 = vmax.f32 %v1515, %v1516
  %v1518 = vrot.slane %v1517, 2
  %v1519 = vmax.f32 %v1517, %v1518
  %v1520 = vrot.slane %v1519, 1
  %v1521 = vmax.f32 %v1519, %v1520
  %v1522 = vsel %vm725, %v1478, -inf
  %v1523 = vsel %vm725, %v1479, -inf
  %v1524 = vmax.f32 %v1522, %v1523
  %v1525 = vrot.slane %v1524, 4
  %v1526 = vmax.f32 %v1524, %v1525
  %v1527 = vrot.slane %v1526, 2
  %v1528 = vmax.f32 %v1526, %v1527
  %v1529 = vrot.slane %v1528, 1
  %v1530 = vmax.f32 %v1528, %v1529
  %v1531 = vsel %vm725, %v1480, -inf
  %v1532 = vsel %vm725, %v1481, -inf
  %v1533 = vmax.f32 %v1531, %v1532
  %v1534 = vrot.slane %v1533, 4
  %v1535 = vmax.f32 %v1533, %v1534
  %v1536 = vrot.slane %v1535, 2
  %v1537 = vmax.f32 %v1535, %v1536
  %v1538 = vrot.slane %v1537, 1
  %v1539 = vmax.f32 %v1537, %v1538
  %v1540 = vsel %vm725, %v1482, -inf
  %v1541 = vsel %vm725, %v1483, -inf
  %v1542 = vmax.f32 %v1540, %v1541
  %v1543 = vrot.slane %v1542, 4
  %v1544 = vmax.f32 %v1542, %v1543
  %v1545 = vrot.slane %v1544, 2
  %v1546 = vmax.f32 %v1544, %v1545
  %v1547 = vrot.slane %v1546, 1
  %v1548 = vmax.f32 %v1546, %v1547
  %v1549 = vsel %vm725, %v1484, -inf
  %v1550 = vsel %vm725, %v1485, -inf
  %v1551 = vmax.f32 %v1549, %v1550
  %v1552 = vrot.slane %v1551, 4
  %v1553 = vmax.f32 %v1551, %v1552
  %v1554 = vrot.slane %v1553, 2
  %v1555 = vmax.f32 %v1553, %v1554
  %v1556 = vrot.slane %v1555, 1
  %v1557 = vmax.f32 %v1555, %v1556
  %v1558 = vmax.f32 %v1494, 0.0
  %v1559 = vmax.f32 %v1503, 0.0
  %v1560 = vmax.f32 %v1512, 0.0
  %v1561 = vmax.f32 %v1521, 0.0
  %v1562 = vmax.f32 %v1530, 0.0
  %v1563 = vmax.f32 %v1539, 0.0
  %v1564 = vmax.f32 %v1548, 0.0
  %v1565 = vmax.f32 %v1557, 0.0
  %v1566 = vld [vmem:[%s7] sm:$0xff]
  %v1567 = vld [vmem:[%s7 + $0x8] sm:$0xff]
  %v1568 = vld [vmem:[%s7 + $0x10] sm:$0xff]
  %v1569 = vld [vmem:[%s7 + $0x18] sm:$0xff]
  %v1570 = vld [vmem:[%s7 + $0x20] sm:$0xff]
  %v1571 = vld [vmem:[%s7 + $0x28] sm:$0xff]
  %v1572 = vld [vmem:[%s8] sm:$0xff]
  %v1573 = vld [vmem:[%s8 + $0x8] sm:$0xff]
  %v1574 = vld [vmem:[%s8 + $0x10] sm:$0xff]
  %v1575 = vld [vmem:[%s8 + $0x18] sm:$0xff]
  %v1576 = vld [vmem:[%s8 + $0x20] sm:$0xff]
  %v1577 = vld [vmem:[%s8 + $0x28] sm:$0xff]
  %vm1586 = vcmask 1041409
  %v1587 = vsel %vm1586, %v1559, %v1558
  %vm1588 = vcmask 1042434
  %v1589 = vsel %vm1588, %v1560, %v1587
  %vm1590 = vcmask 1043459
  %v1591 = vsel %vm1590, %v1561, %v1589
  %vm1592 = vcmask 1044484
  %v1593 = vsel %vm1592, %v1562, %v1591
  %vm1594 = vcmask 1045509
  %v1595 = vsel %vm1594, %v1563, %v1593
  %vm1596 = vcmask 1046534
  %v1597 = vsel %vm1596, %v1564, %v1595
  %vm1598 = vcmask 1047559
  %v1599 = vsel %vm1598, %v1565, %v1597
  %v1600 = vsel %vm725, %v1599, 0
  %1602 = vmatprep.subr.mxu0 0.0
  %1603 = vmatpush1.msra.mxu0 %v1572
  %1604 = vmatprep.subr.mxu0 0.0
  %1605 = vmatpush1.msra.mxu0 %v1573
  %1606 = vmatprep.subr.mxu0 0.0
  %1607 = vmatpush1.msra.mxu0 %v1574
  %1608 = vmatprep.subr.mxu0 0.0
  %1609 = vmatpush1.msra.mxu0 %v1575
  %1610 = vmatprep.subr.mxu0 0.0
  %1611 = vmatpush1.msra.mxu0 %v1576
  %1612 = vmatprep.subr.mxu0 0.0
  %1613 = vmatpush1.msra.mxu0 %v1577
  %1614 = vmatprep.subr.mxu0 0.0
  %1615 = vmatpush1.msra.mxu0 0.0
  %1616 = vmatprep.subr.mxu0 0.0
  %1617 = vmatpush1.msra.mxu0 0.0
  %1618 = vmatprep.subr.mxu0 0.0
  %1619 = vmatpush1.msra.mxu0 0.0
  %1620 = vmatprep.subr.mxu0 0.0
  %1621 = vmatpush1.msra.mxu0 0.0
  %1622 = vmatprep.subr.mxu0 0.0
  %1623 = vmatpush1.msra.mxu0 0.0
  %1624 = vmatprep.subr.mxu0 0.0
  %1625 = vmatpush1.msra.mxu0 0.0
  %1626 = vmatprep.subr.mxu0 0.0
  %1627 = vmatpush1.msra.mxu0 0.0
  %1628 = vmatprep.subr.mxu0 0.0
  %1629 = vmatpush1.msra.mxu0 0.0
  %1630 = vmatprep.subr.mxu0 0.0
  %1631 = vmatpush1.msra.mxu0 0.0
  %1632 = vmatprep.subr.mxu0 0.0
  %1633 = vmatpush1.msra.mxu0 0.0
  %1634 = vmatprep.subr.mxu0 0.0
  %1635 = vmatpush1.msra.mxu0 0.0
  %1636 = vmatprep.subr.mxu0 0.0
  %1637 = vmatpush1.msra.mxu0 0.0
  %1638 = vmatprep.subr.mxu0 0.0
  %1639 = vmatpush1.msra.mxu0 0.0
  %1640 = vmatprep.subr.mxu0 0.0
  %1641 = vmatpush1.msra.mxu0 0.0
  %1642 = vmatprep.subr.mxu0 0.0
  %1643 = vmatpush1.msra.mxu0 0.0
  %1644 = vmatprep.subr.mxu0 0.0
  %1645 = vmatpush1.msra.mxu0 0.0
  %1646 = vmatprep.subr.mxu0 0.0
  %1647 = vmatpush1.msra.mxu0 0.0
  %1648 = vmatprep.subr.mxu0 0.0
  %1649 = vmatpush1.msra.mxu0 0.0
  %1650 = vmatprep.subr.mxu0 0.0
  %1651 = vmatpush1.msra.mxu0 0.0
  %1652 = vmatprep.subr.mxu0 0.0
  %1653 = vmatpush1.msra.mxu0 0.0
  %1654 = vmatprep.subr.mxu0 0.0
  %1655 = vmatpush1.msra.mxu0 0.0
  %1656 = vmatprep.subr.mxu0 0.0
  %1657 = vmatpush1.msra.mxu0 0.0
  %1658 = vmatprep.subr.mxu0 0.0
  %1659 = vmatpush1.msra.mxu0 0.0
  %1660 = vmatprep.subr.mxu0 0.0
  %1661 = vmatpush1.msra.mxu0 0.0
  %1662 = vmatprep.subr.mxu0 0.0
  %1663 = vmatpush1.msra.mxu0 0.0
  %1664 = vmatprep.subr.mxu0 0.0
  %1665 = vmatpush1.msra.mxu0 0.0
  %1666 = vmatprep.mubr.f32.mxu0 0.0
  %1667 = vmatmul.mubr.f32.gmra.mrb[0].mxu0 %v1600
  %v1668 = vpop.f32.mrb[0].mxu0
  %v1669 = vadd.f32 0.0, %v1668
  %v1670 = vpop.f32.mrb[0].mxu0
  %1671 = vdwg.mxu0
  %v1680 = vsel %vm1586, %v799, %v798
  %v1681 = vsel %vm1588, %v800, %v1680
  %v1682 = vsel %vm1590, %v801, %v1681
  %v1683 = vsel %vm1592, %v802, %v1682
  %v1684 = vsel %vm1594, %v803, %v1683
  %v1685 = vsel %vm1596, %v804, %v1684
  %v1686 = vsel %vm1598, %v805, %v1685
  %v1687 = vsel %vm725, %v1686, 0
  %1689 = vmatprep.subr.mxu0 0.0
  %1690 = vmatpush1.msra.mxu0 %v1566
  %1691 = vmatprep.subr.mxu0 0.0
  %1692 = vmatpush1.msra.mxu0 %v1567
  %1693 = vmatprep.subr.mxu0 0.0
  %1694 = vmatpush1.msra.mxu0 %v1568
  %1695 = vmatprep.subr.mxu0 0.0
  %1696 = vmatpush1.msra.mxu0 %v1569
  %1697 = vmatprep.subr.mxu0 0.0
  %1698 = vmatpush1.msra.mxu0 %v1570
  %1699 = vmatprep.subr.mxu0 0.0
  %1700 = vmatpush1.msra.mxu0 %v1571
  %1701 = vmatprep.subr.mxu0 0.0
  %1702 = vmatpush1.msra.mxu0 0.0
  %1703 = vmatprep.subr.mxu0 0.0
  %1704 = vmatpush1.msra.mxu0 0.0
  %1705 = vmatprep.subr.mxu0 0.0
  %1706 = vmatpush1.msra.mxu0 0.0
  %1707 = vmatprep.subr.mxu0 0.0
  %1708 = vmatpush1.msra.mxu0 0.0
  %1709 = vmatprep.subr.mxu0 0.0
  %1710 = vmatpush1.msra.mxu0 0.0
  %1711 = vmatprep.subr.mxu0 0.0
  %1712 = vmatpush1.msra.mxu0 0.0
  %1713 = vmatprep.subr.mxu0 0.0
  %1714 = vmatpush1.msra.mxu0 0.0
  %1715 = vmatprep.subr.mxu0 0.0
  %1716 = vmatpush1.msra.mxu0 0.0
  %1717 = vmatprep.subr.mxu0 0.0
  %1718 = vmatpush1.msra.mxu0 0.0
  %1719 = vmatprep.subr.mxu0 0.0
  %1720 = vmatpush1.msra.mxu0 0.0
  %1721 = vmatprep.subr.mxu0 0.0
  %1722 = vmatpush1.msra.mxu0 0.0
  %1723 = vmatprep.subr.mxu0 0.0
  %1724 = vmatpush1.msra.mxu0 0.0
  %1725 = vmatprep.subr.mxu0 0.0
  %1726 = vmatpush1.msra.mxu0 0.0
  %1727 = vmatprep.subr.mxu0 0.0
  %1728 = vmatpush1.msra.mxu0 0.0
  %1729 = vmatprep.subr.mxu0 0.0
  %1730 = vmatpush1.msra.mxu0 0.0
  %1731 = vmatprep.subr.mxu0 0.0
  %1732 = vmatpush1.msra.mxu0 0.0
  %1733 = vmatprep.subr.mxu0 0.0
  %1734 = vmatpush1.msra.mxu0 0.0
  %1735 = vmatprep.subr.mxu0 0.0
  %1736 = vmatpush1.msra.mxu0 0.0
  %1737 = vmatprep.subr.mxu0 0.0
  %1738 = vmatpush1.msra.mxu0 0.0
  %1739 = vmatprep.subr.mxu0 0.0
  %1740 = vmatpush1.msra.mxu0 0.0
  %1741 = vmatprep.subr.mxu0 0.0
  %1742 = vmatpush1.msra.mxu0 0.0
  %1743 = vmatprep.subr.mxu0 0.0
  %1744 = vmatpush1.msra.mxu0 0.0
  %1745 = vmatprep.subr.mxu0 0.0
  %1746 = vmatpush1.msra.mxu0 0.0
  %1747 = vmatprep.subr.mxu0 0.0
  %1748 = vmatpush1.msra.mxu0 0.0
  %1749 = vmatprep.subr.mxu0 0.0
  %1750 = vmatpush1.msra.mxu0 0.0
  %1751 = vmatprep.subr.mxu0 0.0
  %1752 = vmatpush1.msra.mxu0 0.0
  %1753 = vmatprep.mubr.f32.mxu0 0.0
  %1754 = vmatmul.mubr.f32.gmra.mrb[0].mxu0 %v1687
  %v1755 = vpop.f32.mrb[0].mxu0
  %v1756 = vadd.f32 %v1669, %v1755
  %v1757 = vpop.f32.mrb[0].mxu0
  %1758 = vdwg.mxu0
  %v1759 = vld [vmem:[%s9] sm:$0x1]
  %v1761 = vlaneseq
  %v1762 = vshrl.u32 %v1761, 7
  %v1763 = vsub.s32 0, %v1762
  %v1764 = vrot.slane %v1759, %v1763
  %v1766 = vadd.f32 %v1756, %v1764
  %1767 = vst [vmem:[%s10] sm:$0xff] %v1766
  // Predicated region
  $region42: #{dual_text_cnn_forward.1} parent=0 // pred_check
    _
  $region43: #{dual_text_cnn_forward.1} parent=0 // pred_check_branch
    %1769 = sbr.rel (0) target = $region45
  $region44: #{dual_text_cnn_forward.1} parent=0 // pred_region
    _
  $region45: #{dual_text_cnn_forward.1} parent=0 // pred_fallthru
    _
  // Predicated region
  $region46: #{dual_text_cnn_forward.1} parent=0 // pred_check
    _
  $region47: #{dual_text_cnn_forward.1} parent=0 // pred_check_branch
    %1771 = sbr.rel (0) target = $region49
  $region48: #{dual_text_cnn_forward.1} parent=0 // pred_region
    _
  $region49: #{dual_text_cnn_forward.1} parent=0 // pred_fallthru
    _

</llo_original>
